<compile_context>
chip_gen: v5e
topology: v5e:2x2
jax: 0.10.0
libtpu: 0.0.40
codegen_flags: <defaults>
</compile_context>

<pallas_src>
import math
from functools import partial

import jax
import jax.numpy as jnp
from jax.experimental import pallas as pl
from jax.experimental.pallas import tpu as pltpu


# ----------------------------------------------------------------------------
# Tiling helpers (tiles either equal the full dim or divide it and are 8-mult).
# ----------------------------------------------------------------------------
def _row_tile(n, max_tile=512):
    if n <= max_tile:
        return n
    for t in (512, 256, 128, 64, 32, 16, 8):
        if n % t == 0:
            return t
    return n


def _seq_tile(s, max_tile=256):
    if s <= max_tile:
        return s
    for t in (256, 128, 64, 32, 16, 8):
        if s % t == 0:
            return t
    return s


# ----------------------------------------------------------------------------
# Row-tiled linear: y = x @ W + b  (+ optional residual).  Rows = S*B batched
# so the MXU sees wide matmuls instead of B-row slivers.
# ----------------------------------------------------------------------------
def _linear_kernel(x_ref, w_ref, b_ref, o_ref):
    z = jnp.dot(x_ref[...], w_ref[...], preferred_element_type=jnp.float32)
    o_ref[...] = (z + b_ref[...]).astype(o_ref.dtype)


def _linear_res_kernel(x_ref, w_ref, b_ref, r_ref, o_ref):
    z = jnp.dot(x_ref[...], w_ref[...], preferred_element_type=jnp.float32)
    z = z + b_ref[...] + r_ref[...].astype(jnp.float32)
    o_ref[...] = z.astype(o_ref.dtype)


def linear(x, w, b, residual=None, out_dtype=jnp.bfloat16):
    N, K = x.shape
    O = w.shape[1]
    TR = _row_tile(N)
    # TODO(synk): weight blocks are constant across the grid; at realistic E/H
    # use pipeline_mode=pl.Buffered(1) / manual one-shot DMA to avoid
    # double-buffered weight VMEM on v7x (64 MiB per TC).
    in_specs = [pl.BlockSpec((TR, K), lambda r: (r, 0)),
                pl.BlockSpec((K, O), lambda r: (0, 0)),
                pl.BlockSpec((1, O), lambda r: (0, 0))]
    operands = [x, w, b]
    kernel = _linear_kernel
    if residual is not None:
        in_specs.append(pl.BlockSpec((TR, O), lambda r: (r, 0)))
        operands.append(residual)
        kernel = _linear_res_kernel
    return pl.pallas_call(
        kernel,
        out_shape=jax.ShapeDtypeStruct((N, O), out_dtype),
        grid_spec=pltpu.PrefetchScalarGridSpec(
            num_scalar_prefetch=0,
            grid=(N // TR,),
            in_specs=in_specs,
            out_specs=pl.BlockSpec((TR, O), lambda r: (r, 0))),
        compiler_params=pltpu.CompilerParams(
            dimension_semantics=("parallel",)),
    )(*operands)


# ----------------------------------------------------------------------------
# LSTM recurrence: gates_x (precomputed x@Wih+b) enters per step; only h@Whh
# runs inside the serial loop.  h/c carried in f32 VMEM scratch; final state
# written only on the last grid step.  Gate order i, f, g, o (PyTorch).
# ----------------------------------------------------------------------------
def _lstm_rec_kernel(gx_ref, whh_ref, y_ref, h_out_ref, c_out_ref, h_sc, c_sc):
    s = pl.program_id(0)

    @pl.when(s == 0)
    def _():
        h_sc[...] = jnp.zeros_like(h_sc)
        c_sc[...] = jnp.zeros_like(c_sc)

    E = h_sc.shape[-1]
    gates = gx_ref[0] + jnp.dot(h_sc[...].astype(whh_ref.dtype), whh_ref[...],
                                preferred_element_type=jnp.float32)   # (B, 4E)
    # Gate slices are lane-dense when E % 128 == 0 (toy E=32 is sub-vreg).
    i = jax.nn.sigmoid(gates[:, 0 * E:1 * E])
    f = jax.nn.sigmoid(gates[:, 1 * E:2 * E])
    g = jnp.tanh(gates[:, 2 * E:3 * E])
    o = jax.nn.sigmoid(gates[:, 3 * E:4 * E])
    c = f * c_sc[...] + i * g
    h = o * jnp.tanh(c)
    h_sc[...] = h
    c_sc[...] = c
    y_ref[0] = h.astype(y_ref.dtype)

    @pl.when(s == pl.num_programs(0) - 1)          # final state written once
    def _():
        h_out_ref[0] = h_sc[...]
        c_out_ref[0] = c_sc[...]


def lstm_recurrent(gates_x, whh, out_dtype):
    S, B, E4 = gates_x.shape
    E = E4 // 4
    return pl.pallas_call(
        _lstm_rec_kernel,
        out_shape=(jax.ShapeDtypeStruct((S, B, E), out_dtype),
                   jax.ShapeDtypeStruct((1, B, E), jnp.float32),
                   jax.ShapeDtypeStruct((1, B, E), jnp.float32)),
        grid_spec=pltpu.PrefetchScalarGridSpec(
            num_scalar_prefetch=0,
            grid=(S,),
            in_specs=[pl.BlockSpec((1, B, E4), lambda s: (s, 0, 0)),
                      pl.BlockSpec((E, E4), lambda s: (0, 0))],
            out_specs=[pl.BlockSpec((1, B, E), lambda s: (s, 0, 0)),
                       pl.BlockSpec((1, B, E), lambda s: (0, 0, 0)),
                       pl.BlockSpec((1, B, E), lambda s: (0, 0, 0))],
            scratch_shapes=[pltpu.VMEM((B, E), jnp.float32),
                            pltpu.VMEM((B, E), jnp.float32)]),
        compiler_params=pltpu.CompilerParams(
            dimension_semantics=("arbitrary",)),
    )(gates_x, whh)


# ----------------------------------------------------------------------------
# LayerNorm (eps=1e-12) over flattened (S*B, E) rows, row-tiled, f32 stats.
# ----------------------------------------------------------------------------
def _layernorm_kernel(x_ref, g_ref, b_ref, o_ref):
    x = x_ref[...].astype(jnp.float32)             # (TR, E)
    mean = jnp.mean(x, axis=-1, keepdims=True)
    var = jnp.mean(jnp.square(x - mean), axis=-1, keepdims=True)
    y = (x - mean) * jax.lax.rsqrt(var + 1e-12) * g_ref[...] + b_ref[...]
    o_ref[...] = y.astype(o_ref.dtype)


def layernorm(x, gamma, beta):
    N, E = x.shape
    TR = _row_tile(N)
    return pl.pallas_call(
        _layernorm_kernel,
        out_shape=jax.ShapeDtypeStruct((N, E), x.dtype),
        grid_spec=pltpu.PrefetchScalarGridSpec(
            num_scalar_prefetch=0,
            grid=(N // TR,),
            in_specs=[pl.BlockSpec((TR, E), lambda r: (r, 0)),
                      pl.BlockSpec((1, E), lambda r: (0, 0)),
                      pl.BlockSpec((1, E), lambda r: (0, 0))],
            out_specs=pl.BlockSpec((TR, E), lambda r: (r, 0))),
        compiler_params=pltpu.CompilerParams(
            dimension_semantics=("parallel",)),
    )(x, gamma, beta)


# ----------------------------------------------------------------------------
# Flash-style attention core on pre-projected heads: q/k/v are (B*nhead, S, dh)
# bf16; grid over (query tile, kv tile) with online softmax in f32 scratch and
# an iota-based causal mask (no [S, S] mask array in HBM/VMEM).
# ----------------------------------------------------------------------------
def _attn_kernel(q_ref, k_ref, v_ref, o_ref, m_sc, l_sc, acc_sc,
                 *, tq, tk, scale):
    qi = pl.program_id(0)
    ki = pl.program_id(1)

    @pl.when(ki == 0)
    def _():
        m_sc[...] = jnp.full_like(m_sc, -jnp.inf)
        l_sc[...] = jnp.zeros_like(l_sc)
        acc_sc[...] = jnp.zeros_like(acc_sc)

    # Skip kv blocks that lie entirely in the causal future of this q block.
    @pl.when(qi * tq + (tq - 1) >= ki * tk)
    def _():
        q = q_ref[...]                             # (BH, tq, dh)
        k = k_ref[...]                             # (BH, tk, dh)
        v = v_ref[...]
        s = jnp.einsum('bqd,bkd->bqk', q, k,
                       preferred_element_type=jnp.float32) * scale
        q_abs = qi * tq + jax.lax.broadcasted_iota(jnp.int32, (tq, tk), 0)
        k_abs = ki * tk + jax.lax.broadcasted_iota(jnp.int32, (tq, tk), 1)
        mask = jnp.where(k_abs > q_abs, -1e30, 0.0).astype(jnp.float32)
        s = s + mask[None, :, :]
        m_new = jnp.maximum(m_sc[...], s.max(axis=-1, keepdims=True))
        a = jnp.exp(m_sc[...] - m_new)
        p = jnp.exp(s - m_new)
        l_sc[...] = a * l_sc[...] + p.sum(axis=-1, keepdims=True)
        acc_sc[...] = a * acc_sc[...] + jnp.einsum(
            'bqk,bkd->bqd', p.astype(v.dtype), v,
            preferred_element_type=jnp.float32)
        m_sc[...] = m_new

    @pl.when(ki == pl.num_programs(1) - 1)
    def _():
        o_ref[...] = (acc_sc[...] *
                      pl.reciprocal(l_sc[...], approx=True)).astype(o_ref.dtype)


def attention_core(q, k, v):
    BH, S, dh = q.shape
    tq = _seq_tile(S)
    tk = _seq_tile(S)
    scale = 1.0 / math.sqrt(dh)
    return pl.pallas_call(
        partial(_attn_kernel, tq=tq, tk=tk, scale=scale),
        out_shape=jax.ShapeDtypeStruct((BH, S, dh), q.dtype),
        grid_spec=pltpu.PrefetchScalarGridSpec(
            num_scalar_prefetch=0,
            grid=(S // tq, S // tk),
            in_specs=[pl.BlockSpec((BH, tq, dh), lambda qi, ki: (0, qi, 0)),
                      pl.BlockSpec((BH, tk, dh), lambda qi, ki: (0, ki, 0)),
                      pl.BlockSpec((BH, tk, dh), lambda qi, ki: (0, ki, 0))],
            out_specs=pl.BlockSpec((BH, tq, dh), lambda qi, ki: (0, qi, 0)),
            scratch_shapes=[pltpu.VMEM((BH, tq, 1), jnp.float32),
                            pltpu.VMEM((BH, tq, 1), jnp.float32),
                            pltpu.VMEM((BH, tq, dh), jnp.float32)]),
        compiler_params=pltpu.CompilerParams(
            dimension_semantics=("parallel", "arbitrary")),
    )(q, k, v)


# ----------------------------------------------------------------------------
# Boom feed-forward: rows flattened to (S*B, E), row-tiled.
# Linear(E->H) -> GELU(f32) -> sum-fold shortcut (H->E) -> +x residual.
# ----------------------------------------------------------------------------
def _boom_kernel(x_ref, w1_ref, b1_ref, o_ref):
    x = x_ref[...]                                 # (TR, E) bf16
    z = jnp.dot(x, w1_ref[...], preferred_element_type=jnp.float32) + b1_ref[...]
    # tanh-approximate GELU in f32 (v5e-safe)
    z = 0.5 * z * (1.0 + jnp.tanh(0.7978845608028654 * (z + 0.044715 * z * z * z)))
    E = x.shape[-1]
    H = z.shape[-1]
    acc = z[:, 0:E]
    for c in range(1, H // E):                     # shortcut: fold H back into E
        acc = acc + z[:, c * E:(c + 1) * E]
    o_ref[...] = (x.astype(jnp.float32) + acc).astype(o_ref.dtype)


def boom(x, w1, b1):
    N, E = x.shape
    H = w1.shape[1]
    TR = _row_tile(N)
    return pl.pallas_call(
        _boom_kernel,
        out_shape=jax.ShapeDtypeStruct((N, E), x.dtype),
        grid_spec=pltpu.PrefetchScalarGridSpec(
            num_scalar_prefetch=0,
            grid=(N // TR,),
            in_specs=[pl.BlockSpec((TR, E), lambda r: (r, 0)),
                      pl.BlockSpec((E, H), lambda r: (0, 0)),
                      pl.BlockSpec((1, H), lambda r: (0, 0))],
            out_specs=pl.BlockSpec((TR, E), lambda r: (r, 0))),
        compiler_params=pltpu.CompilerParams(
            dimension_semantics=("parallel",)),
    )(x, w1, b1)


# ----------------------------------------------------------------------------
# Head-layout plumbing (plain JAX, outside kernels).
# ----------------------------------------------------------------------------
def _to_heads(x, nhead):                           # (S,B,E) -> (B*nhead, S, dh)
    S, B, E = x.shape
    dh = E // nhead
    return x.reshape(S, B, nhead, dh).transpose(1, 2, 0, 3).reshape(B * nhead, S, dh)


def _from_heads(x, B, nhead):                      # (B*nhead, S, dh) -> (S,B,E)
    BH, S, dh = x.shape
    return x.reshape(B, nhead, S, dh).transpose(2, 0, 1, 3).reshape(S, B, nhead * dh)


# ----------------------------------------------------------------------------
# Model orchestration (glue, plain JAX).
# ----------------------------------------------------------------------------
def block_forward(vec, p, use_attn, nhead):
    S, B, E = vec.shape
    x2d = vec.reshape(S * B, E)

    # LSTM: input projection hoisted out of the recurrence into one big matmul.
    gates_x = linear(x2d, p['wih'], p['b'], out_dtype=jnp.float32)
    y, h_n, c_n = lstm_recurrent(gates_x.reshape(S, B, 4 * E), p['whh'],
                                 out_dtype=vec.dtype)
    ret = y
    new_mem = None
    if use_attn:
        y2d = y.reshape(S * B, E)
        mh2d = layernorm(y2d, p['lnmem_g'], p['lnmem_b'])     # lnmem
        # (reference also computes lnmid(ret) but never uses it -- skipped)
        new_mem = mh2d.reshape(S, B, E)            # mem is None -> bigh = lnmem(ret)

        # Batched QKV projections (k and v share one matmul).
        qp = linear(y2d, p['wq'], p['bq'])
        kvp = linear(mh2d, jnp.concatenate([p['wk'], p['wv']], axis=1),
                     jnp.concatenate([p['bk'], p['bv']], axis=1))
        kp, vp = kvp[:, :E], kvp[:, E:]

        qh = _to_heads(qp.reshape(S, B, E), nhead)
        kh = _to_heads(kp.reshape(S, B, E), nhead)
        vh = _to_heads(vp.reshape(S, B, E), nhead)
        ctx = attention_core(qh, kh, vh)                      # (B*nhead, S, dh)
        ctx2d = _from_heads(ctx, B, nhead).reshape(S * B, E)

        # output projection fused with the +q residual
        ret = linear(ctx2d, p['wo'], p['bo'], residual=y2d).reshape(S, B, E)

    ret = boom(ret.reshape(S * B, E), p['w1'], p['b1']).reshape(S, B, E)
    return ret, new_mem, (h_n, c_n)


def sharnn_forward(tokens, params, nlayer, nhead):
    # tokens: [S, B] int32 ("Input has shape [seq length, batch]")
    vec = params['embedding'][tokens].astype(jnp.bfloat16)   # prepare_input -> [S,B,E]
    new_hidden, new_mems = [], []
    for idx in range(nlayer):
        use_attn = (idx == nlayer - 2)
        vec, m, nh = block_forward(vec, params['blocks'][idx], use_attn, nhead)
        new_hidden.append(nh)
        new_mems.append(m)
    rep = jnp.transpose(vec, (1, 0, 2))            # [B, S, E]
    return rep, {'mems': new_mems, 'hidden': new_hidden}


def init_params(key, vocab, E, H, nlayer):
    keys = jax.random.split(key, 64)
    it = iter(range(64))

    def nrm(shape, scale=0.02, dtype=jnp.bfloat16):
        return (scale * jax.random.normal(keys[next(it)], shape)).astype(dtype)

    params = {'embedding': nrm((vocab, E), dtype=jnp.float32), 'blocks': []}
    for _ in range(nlayer):
        blk = {
            'wih': nrm((E, 4 * E)), 'whh': nrm((E, 4 * E)),
            'b': jnp.zeros((1, 4 * E), jnp.float32),          # b_ih + b_hh
            'w1': nrm((E, H)), 'b1': jnp.zeros((1, H), jnp.float32),
            'lnmem_g': jnp.ones((1, E), jnp.float32),
            'lnmem_b': jnp.zeros((1, E), jnp.float32),
            'wq': nrm((E, E)), 'wk': nrm((E, E)),
            'wv': nrm((E, E)), 'wo': nrm((E, E)),
            'bq': jnp.zeros((1, E), jnp.float32),
            'bk': jnp.zeros((1, E), jnp.float32),
            'bv': jnp.zeros((1, E), jnp.float32),
            'bo': jnp.zeros((1, E), jnp.float32),
        }
        params['blocks'].append(blk)
    return params


if __name__ == "__main__":
    S, B, E, HID, NLAYER, NHEAD, VOCAB = 8, 2, 32, 64, 3, 2, 50

    key = jax.random.PRNGKey(0)
    k_tok, k_par = jax.random.split(key)
    tokens = jax.random.randint(k_tok, (S, B), 0, VOCAB, dtype=jnp.int32)
    params = init_params(k_par, VOCAB, E, HID, NLAYER)

    fwd = jax.jit(partial(sharnn_forward, nlayer=NLAYER, nhead=NHEAD))
    rep, ret = fwd(tokens, params)
    rep = jax.block_until_ready(rep)
    for h, c in ret['hidden']:
        jax.block_until_ready(h)
        jax.block_until_ready(c)

    assert rep.shape == (B, S, E), rep.shape
    assert bool(jnp.isfinite(rep.astype(jnp.float32)).all())
    print("KERNEL_OK")
</pallas_src>

<mosaic_0001>
module attributes {stable_mosaic.version = 11 : i64} {
  func.func @_lstm_rec_kernel(%arg0: i32, %arg1: memref<1x2x128xf32, #tpu.memory_space<vmem>>, %arg2: memref<32x128xbf16, #tpu.memory_space<vmem>>, %arg3: memref<1x2x32xbf16, #tpu.memory_space<vmem>>, %arg4: memref<1x2x32xf32, #tpu.memory_space<vmem>>, %arg5: memref<1x2x32xf32, #tpu.memory_space<vmem>>, %arg6: memref<2x32xf32, #tpu.memory_space<vmem>>, %arg7: memref<2x32xf32, #tpu.memory_space<vmem>>) attributes {dimension_semantics = [#tpu.dimension_semantics<arbitrary>], iteration_bounds = array<i64: 8>, scalar_prefetch = 0 : i64, scratch_operands = 2 : i64, tpu.core_type = #tpu.core_type<tc>, window_params = [{transform_indices = @transform_0, window_bounds = array<i64: 1, 2, 128>}, {pipeline_mode = #tpu.pipeline_mode<synchronous>, transform_indices = @transform_1, window_bounds = array<i64: 32, 128>}, {transform_indices = @transform_2, window_bounds = array<i64: 1, 2, 32>}, {pipeline_mode = #tpu.pipeline_mode<synchronous>, transform_indices = @transform_3, window_bounds = array<i64: 1, 2, 32>}, {pipeline_mode = #tpu.pipeline_mode<synchronous>, transform_indices = @transform_4, window_bounds = array<i64: 1, 2, 32>}]} {
    %c0_i32 = arith.constant 0 : i32
    %0 = arith.cmpi eq, %arg0, %c0_i32 : i32
    %1 = arith.extui %0 : i1 to i32
    %c0_i32_0 = arith.constant 0 : i32
    %2 = arith.cmpi ne, %1, %c0_i32_0 : i32
    scf.if %2 {
      %cst_20 = arith.constant 0.000000e+00 : f32
      %45 = vector.broadcast %cst_20 : f32 to vector<2x32xf32>
      %c0_21 = arith.constant 0 : index
      %c0_22 = arith.constant 0 : index
      %46 = vector.load %arg6[%c0_21, %c0_22] : memref<2x32xf32, #tpu.memory_space<vmem>>, vector<2x32xf32>
      tpu.vector_store %arg6[%c0_21, %c0_22], %45 {strides = array<i32>} : memref<2x32xf32, #tpu.memory_space<vmem>>, vector<2x32xf32>,
      %cst_23 = arith.constant 0.000000e+00 : f32
      %47 = vector.broadcast %cst_23 : f32 to vector<2x32xf32>
      %c0_24 = arith.constant 0 : index
      %c0_25 = arith.constant 0 : index
      %48 = vector.load %arg7[%c0_24, %c0_25] : memref<2x32xf32, #tpu.memory_space<vmem>>, vector<2x32xf32>
      tpu.vector_store %arg7[%c0_24, %c0_25], %47 {strides = array<i32>} : memref<2x32xf32, #tpu.memory_space<vmem>>, vector<2x32xf32>,
    } else {
    }
    %c0 = arith.constant 0 : index
    %c0_1 = arith.constant 0 : index
    %c0_2 = arith.constant 0 : index
    %3 = vector.load %arg1[%c0, %c0_1, %c0_2] : memref<1x2x128xf32, #tpu.memory_space<vmem>>, vector<1x2x128xf32>
    %4 = vector.shape_cast %3 : vector<1x2x128xf32> to vector<2x128xf32>
    %c0_3 = arith.constant 0 : index
    %c0_4 = arith.constant 0 : index
    %5 = vector.load %arg6[%c0_3, %c0_4] : memref<2x32xf32, #tpu.memory_space<vmem>>, vector<2x32xf32>
    %6 = arith.truncf %5 : vector<2x32xf32> to vector<2x32xbf16>
    %c0_5 = arith.constant 0 : index
    %c0_6 = arith.constant 0 : index
    %7 = vector.load %arg2[%c0_5, %c0_6] : memref<32x128xbf16, #tpu.memory_space<vmem>>, vector<32x128xbf16>
    %cst = arith.constant dense<0.000000e+00> : vector<2x128xf32>
    %8 = tpu.matmul %6, %7, %cst {dimension_numbers = #tpu.dot_dimension_numbers<[1], [0], [0], [1], [0, 0, 1, 1], [], []>} : vector<2x32xbf16>, vector<32x128xbf16>, vector<2x128xf32> -> vector<2x128xf32>
    %9 = arith.addf %4, %8 : vector<2x128xf32>
    %10 = vector.extract_strided_slice %9 {offsets = [0, 0], sizes = [2, 32], strides = [1, 1]} : vector<2x128xf32> to vector<2x32xf32>
    %11 = arith.negf %10 : vector<2x32xf32>
    %12 = math.exp %11 : vector<2x32xf32>
    %cst_7 = arith.constant 1.000000e+00 : f32
    %13 = vector.broadcast %cst_7 : f32 to vector<2x32xf32>
    %14 = arith.addf %13, %12 : vector<2x32xf32>
    %15 = arith.divf %13, %14 : vector<2x32xf32>
    %16 = vector.extract_strided_slice %9 {offsets = [0, 32], sizes = [2, 32], strides = [1, 1]} : vector<2x128xf32> to vector<2x32xf32>
    %17 = arith.negf %16 : vector<2x32xf32>
    %18 = math.exp %17 : vector<2x32xf32>
    %cst_8 = arith.constant 1.000000e+00 : f32
    %19 = vector.broadcast %cst_8 : f32 to vector<2x32xf32>
    %20 = arith.addf %19, %18 : vector<2x32xf32>
    %21 = arith.divf %19, %20 : vector<2x32xf32>
    %22 = vector.extract_strided_slice %9 {offsets = [0, 64], sizes = [2, 32], strides = [1, 1]} : vector<2x128xf32> to vector<2x32xf32>
    %23 = math.tanh %22 : vector<2x32xf32>
    %24 = vector.extract_strided_slice %9 {offsets = [0, 96], sizes = [2, 32], strides = [1, 1]} : vector<2x128xf32> to vector<2x32xf32>
    %25 = arith.negf %24 : vector<2x32xf32>
    %26 = math.exp %25 : vector<2x32xf32>
    %cst_9 = arith.constant 1.000000e+00 : f32
    %27 = vector.broadcast %cst_9 : f32 to vector<2x32xf32>
    %28 = arith.addf %27, %26 : vector<2x32xf32>
    %29 = arith.divf %27, %28 : vector<2x32xf32>
    %c0_10 = arith.constant 0 : index
    %c0_11 = arith.constant 0 : index
    %30 = vector.load %arg7[%c0_10, %c0_11] : memref<2x32xf32, #tpu.memory_space<vmem>>, vector<2x32xf32>
    %31 = arith.mulf %21, %30 : vector<2x32xf32>
    %32 = arith.mulf %15, %23 : vector<2x32xf32>
    %33 = arith.addf %31, %32 : vector<2x32xf32>
    %34 = math.tanh %33 : vector<2x32xf32>
    %35 = arith.mulf %29, %34 : vector<2x32xf32>
    %c0_12 = arith.constant 0 : index
    %c0_13 = arith.constant 0 : index
    %36 = vector.load %arg6[%c0_12, %c0_13] : memref<2x32xf32, #tpu.memory_space<vmem>>, vector<2x32xf32>
    tpu.vector_store %arg6[%c0_12, %c0_13], %35 {strides = array<i32>} : memref<2x32xf32, #tpu.memory_space<vmem>>, vector<2x32xf32>,
    %c0_14 = arith.constant 0 : index
    %c0_15 = arith.constant 0 : index
    %37 = vector.load %arg7[%c0_14, %c0_15] : memref<2x32xf32, #tpu.memory_space<vmem>>, vector<2x32xf32>
    tpu.vector_store %arg7[%c0_14, %c0_15], %33 {strides = array<i32>} : memref<2x32xf32, #tpu.memory_space<vmem>>, vector<2x32xf32>,
    %38 = arith.truncf %35 : vector<2x32xf32> to vector<2x32xbf16>
    %c0_16 = arith.constant 0 : index
    %c0_17 = arith.constant 0 : index
    %c0_18 = arith.constant 0 : index
    %39 = vector.load %arg3[%c0_16, %c0_17, %c0_18] : memref<1x2x32xbf16, #tpu.memory_space<vmem>>, vector<1x2x32xbf16>
    %40 = vector.shape_cast %39 : vector<1x2x32xbf16> to vector<2x32xbf16>
    %41 = vector.shape_cast %38 : vector<2x32xbf16> to vector<1x2x32xbf16>
    tpu.vector_store %arg3[%c0_16, %c0_17, %c0_18], %41 {strides = array<i32>} : memref<1x2x32xbf16, #tpu.memory_space<vmem>>, vector<1x2x32xbf16>,
    %c7_i32 = arith.constant 7 : i32
    %42 = arith.cmpi eq, %arg0, %c7_i32 : i32
    %43 = arith.extui %42 : i1 to i32
    %c0_i32_19 = arith.constant 0 : i32
    %44 = arith.cmpi ne, %43, %c0_i32_19 : i32
    scf.if %44 {
      %c0_20 = arith.constant 0 : index
      %c0_21 = arith.constant 0 : index
      %45 = vector.load %arg6[%c0_20, %c0_21] : memref<2x32xf32, #tpu.memory_space<vmem>>, vector<2x32xf32>
      %c0_22 = arith.constant 0 : index
      %c0_23 = arith.constant 0 : index
      %c0_24 = arith.constant 0 : index
      %46 = vector.load %arg4[%c0_22, %c0_23, %c0_24] : memref<1x2x32xf32, #tpu.memory_space<vmem>>, vector<1x2x32xf32>
      %47 = vector.shape_cast %46 : vector<1x2x32xf32> to vector<2x32xf32>
      %48 = vector.shape_cast %45 : vector<2x32xf32> to vector<1x2x32xf32>
      tpu.vector_store %arg4[%c0_22, %c0_23, %c0_24], %48 {strides = array<i32>} : memref<1x2x32xf32, #tpu.memory_space<vmem>>, vector<1x2x32xf32>,
      %c0_25 = arith.constant 0 : index
      %c0_26 = arith.constant 0 : index
      %49 = vector.load %arg7[%c0_25, %c0_26] : memref<2x32xf32, #tpu.memory_space<vmem>>, vector<2x32xf32>
      %c0_27 = arith.constant 0 : index
      %c0_28 = arith.constant 0 : index
      %c0_29 = arith.constant 0 : index
      %50 = vector.load %arg5[%c0_27, %c0_28, %c0_29] : memref<1x2x32xf32, #tpu.memory_space<vmem>>, vector<1x2x32xf32>
      %51 = vector.shape_cast %50 : vector<1x2x32xf32> to vector<2x32xf32>
      %52 = vector.shape_cast %49 : vector<2x32xf32> to vector<1x2x32xf32>
      tpu.vector_store %arg5[%c0_27, %c0_28, %c0_29], %52 {strides = array<i32>} : memref<1x2x32xf32, #tpu.memory_space<vmem>>, vector<1x2x32xf32>,
    } else {
    }
    return
  }
  func.func @transform_0(%arg0: i32) -> (i32, i32, i32) {
    %c0_i32 = arith.constant 0 : i32
    %c0_i32_0 = arith.constant 0 : i32
    %c0_i32_1 = arith.constant 0 : i32
    return %arg0, %c0_i32, %c0_i32_0 : i32, i32, i32
  }
  func.func @transform_1(%arg0: i32) -> (i32, i32) {
    %c0_i32 = arith.constant 0 : i32
    %c0_i32_0 = arith.constant 0 : i32
    %c0_i32_1 = arith.constant 0 : i32
    return %c0_i32, %c0_i32_0 : i32, i32
  }
  func.func @transform_2(%arg0: i32) -> (i32, i32, i32) {
    %c0_i32 = arith.constant 0 : i32
    %c0_i32_0 = arith.constant 0 : i32
    %c0_i32_1 = arith.constant 0 : i32
    return %arg0, %c0_i32, %c0_i32_0 : i32, i32, i32
  }
  func.func @transform_3(%arg0: i32) -> (i32, i32, i32) {
    %c0_i32 = arith.constant 0 : i32
    %c0_i32_0 = arith.constant 0 : i32
    %c0_i32_1 = arith.constant 0 : i32
    %c0_i32_2 = arith.constant 0 : i32
    return %c0_i32, %c0_i32_0, %c0_i32_1 : i32, i32, i32
  }
  func.func @transform_4(%arg0: i32) -> (i32, i32, i32) {
    %c0_i32 = arith.constant 0 : i32
    %c0_i32_0 = arith.constant 0 : i32
    %c0_i32_1 = arith.constant 0 : i32
    %c0_i32_2 = arith.constant 0 : i32
    return %c0_i32, %c0_i32_0, %c0_i32_1 : i32, i32, i32
  }
}

module attributes {stable_mosaic.version = 11 : i64} {
  func.func @_linear_kernel(%arg0: i32, %arg1: memref<16x32xbf16, #tpu.memory_space<vmem>>, %arg2: memref<32x128xbf16, #tpu.memory_space<vmem>>, %arg3: memref<1x128xf32, #tpu.memory_space<vmem>>, %arg4: memref<16x128xf32, #tpu.memory_space<vmem>>) attributes {dimension_semantics = [#tpu.dimension_semantics<parallel>], iteration_bounds = array<i64: 1>, scalar_prefetch = 0 : i64, scratch_operands = 0 : i64, tpu.core_type = #tpu.core_type<tc>, window_params = [{transform_indices = @transform_0, window_bounds = array<i64: 16, 32>}, {pipeline_mode = #tpu.pipeline_mode<synchronous>, transform_indices = @transform_1, window_bounds = array<i64: 32, 128>}, {pipeline_mode = #tpu.pipeline_mode<synchronous>, transform_indices = @transform_2, window_bounds = array<i64: 1, 128>}, {transform_indices = @transform_3, window_bounds = array<i64: 16, 128>}]} {
    %c0 = arith.constant 0 : index
    %c0_0 = arith.constant 0 : index
    %0 = vector.load %arg1[%c0, %c0_0] : memref<16x32xbf16, #tpu.memory_space<vmem>>, vector<16x32xbf16>
    %c0_1 = arith.constant 0 : index
    %c0_2 = arith.constant 0 : index
    %1 = vector.load %arg2[%c0_1, %c0_2] : memref<32x128xbf16, #tpu.memory_space<vmem>>, vector<32x128xbf16>
    %cst = arith.constant dense<0.000000e+00> : vector<16x128xf32>
    %2 = tpu.matmul %0, %1, %cst {dimension_numbers = #tpu.dot_dimension_numbers<[1], [0], [0], [1], [0, 0, 1, 1], [], []>} : vector<16x32xbf16>, vector<32x128xbf16>, vector<16x128xf32> -> vector<16x128xf32>
    %c0_3 = arith.constant 0 : index
    %c0_4 = arith.constant 0 : index
    %3 = vector.load %arg3[%c0_3, %c0_4] : memref<1x128xf32, #tpu.memory_space<vmem>>, vector<1x128xf32>
    %4 = vector.broadcast %3 : vector<1x128xf32> to vector<16x128xf32>
    %5 = arith.addf %2, %4 : vector<16x128xf32>
    %c0_5 = arith.constant 0 : index
    %c0_6 = arith.constant 0 : index
    %6 = vector.load %arg4[%c0_5, %c0_6] : memref<16x128xf32, #tpu.memory_space<vmem>>, vector<16x128xf32>
    tpu.vector_store %arg4[%c0_5, %c0_6], %5 {strides = array<i32>} : memref<16x128xf32, #tpu.memory_space<vmem>>, vector<16x128xf32>,
    return
  }
  func.func @transform_0(%arg0: i32) -> (i32, i32) {
    %c0_i32 = arith.constant 0 : i32
    %c0_i32_0 = arith.constant 0 : i32
    return %arg0, %c0_i32 : i32, i32
  }
  func.func @transform_1(%arg0: i32) -> (i32, i32) {
    %c0_i32 = arith.constant 0 : i32
    %c0_i32_0 = arith.constant 0 : i32
    %c0_i32_1 = arith.constant 0 : i32
    return %c0_i32, %c0_i32_0 : i32, i32
  }
  func.func @transform_2(%arg0: i32) -> (i32, i32) {
    %c0_i32 = arith.constant 0 : i32
    %c0_i32_0 = arith.constant 0 : i32
    %c0_i32_1 = arith.constant 0 : i32
    return %c0_i32, %c0_i32_0 : i32, i32
  }
  func.func @transform_3(%arg0: i32) -> (i32, i32) {
    %c0_i32 = arith.constant 0 : i32
    %c0_i32_0 = arith.constant 0 : i32
    return %arg0, %c0_i32 : i32, i32
  }
}

module attributes {stable_mosaic.version = 11 : i64} {
  func.func @_layernorm_kernel(%arg0: i32, %arg1: memref<16x32xbf16, #tpu.memory_space<vmem>>, %arg2: memref<1x32xf32, #tpu.memory_space<vmem>>, %arg3: memref<1x32xf32, #tpu.memory_space<vmem>>, %arg4: memref<16x32xbf16, #tpu.memory_space<vmem>>) attributes {dimension_semantics = [#tpu.dimension_semantics<parallel>], iteration_bounds = array<i64: 1>, scalar_prefetch = 0 : i64, scratch_operands = 0 : i64, tpu.core_type = #tpu.core_type<tc>, window_params = [{transform_indices = @transform_0, window_bounds = array<i64: 16, 32>}, {pipeline_mode = #tpu.pipeline_mode<synchronous>, transform_indices = @transform_1, window_bounds = array<i64: 1, 32>}, {pipeline_mode = #tpu.pipeline_mode<synchronous>, transform_indices = @transform_2, window_bounds = array<i64: 1, 32>}, {transform_indices = @transform_3, window_bounds = array<i64: 16, 32>}]} {
    %c0 = arith.constant 0 : index
    %c0_0 = arith.constant 0 : index
    %0 = vector.load %arg1[%c0, %c0_0] : memref<16x32xbf16, #tpu.memory_space<vmem>>, vector<16x32xbf16>
    %1 = arith.extf %0 : vector<16x32xbf16> to vector<16x32xf32>
    %cst = arith.constant dense<0.000000e+00> : vector<16xf32>
    %2 = vector.multi_reduction <add>, %1, %cst [1] : vector<16x32xf32> to vector<16xf32>
    %3 = vector.shape_cast %2 : vector<16xf32> to vector<16x1xf32>
    %cst_1 = arith.constant 3.200000e+01 : f32
    %4 = vector.broadcast %cst_1 : f32 to vector<16x1xf32>
    %5 = arith.divf %3, %4 : vector<16x1xf32>
    %6 = vector.broadcast %5 : vector<16x1xf32> to vector<16x32xf32>
    %7 = arith.subf %1, %6 : vector<16x32xf32>
    %8 = arith.mulf %7, %7 : vector<16x32xf32>
    %cst_2 = arith.constant dense<0.000000e+00> : vector<16xf32>
    %9 = vector.multi_reduction <add>, %8, %cst_2 [1] : vector<16x32xf32> to vector<16xf32>
    %10 = vector.shape_cast %9 : vector<16xf32> to vector<16x1xf32>
    %cst_3 = arith.constant 3.200000e+01 : f32
    %11 = vector.broadcast %cst_3 : f32 to vector<16x1xf32>
    %12 = arith.divf %10, %11 : vector<16x1xf32>
    %13 = vector.broadcast %5 : vector<16x1xf32> to vector<16x32xf32>
    %14 = arith.subf %1, %13 : vector<16x32xf32>
    %cst_4 = arith.constant 9.99999996E-13 : f32
    %15 = vector.broadcast %cst_4 : f32 to vector<16x1xf32>
    %16 = arith.addf %12, %15 : vector<16x1xf32>
    %17 = math.rsqrt %16 : vector<16x1xf32>
    %18 = vector.broadcast %17 : vector<16x1xf32> to vector<16x32xf32>
    %19 = arith.mulf %14, %18 : vector<16x32xf32>
    %c0_5 = arith.constant 0 : index
    %c0_6 = arith.constant 0 : index
    %20 = vector.load %arg2[%c0_5, %c0_6] : memref<1x32xf32, #tpu.memory_space<vmem>>, vector<1x32xf32>
    %21 = vector.broadcast %20 : vector<1x32xf32> to vector<16x32xf32>
    %22 = arith.mulf %19, %21 : vector<16x32xf32>
    %c0_7 = arith.constant 0 : index
    %c0_8 = arith.constant 0 : index
    %23 = vector.load %arg3[%c0_7, %c0_8] : memref<1x32xf32, #tpu.memory_space<vmem>>, vector<1x32xf32>
    %24 = vector.broadcast %23 : vector<1x32xf32> to vector<16x32xf32>
    %25 = arith.addf %22, %24 : vector<16x32xf32>
    %26 = arith.truncf %25 : vector<16x32xf32> to vector<16x32xbf16>
    %c0_9 = arith.constant 0 : index
    %c0_10 = arith.constant 0 : index
    %27 = vector.load %arg4[%c0_9, %c0_10] : memref<16x32xbf16, #tpu.memory_space<vmem>>, vector<16x32xbf16>
    tpu.vector_store %arg4[%c0_9, %c0_10], %26 {strides = array<i32>} : memref<16x32xbf16, #tpu.memory_space<vmem>>, vector<16x32xbf16>,
    return
  }
  func.func @transform_0(%arg0: i32) -> (i32, i32) {
    %c0_i32 = arith.constant 0 : i32
    %c0_i32_0 = arith.constant 0 : i32
    return %arg0, %c0_i32 : i32, i32
  }
  func.func @transform_1(%arg0: i32) -> (i32, i32) {
    %c0_i32 = arith.constant 0 : i32
    %c0_i32_0 = arith.constant 0 : i32
    %c0_i32_1 = arith.constant 0 : i32
    return %c0_i32, %c0_i32_0 : i32, i32
  }
  func.func @transform_2(%arg0: i32) -> (i32, i32) {
    %c0_i32 = arith.constant 0 : i32
    %c0_i32_0 = arith.constant 0 : i32
    %c0_i32_1 = arith.constant 0 : i32
    return %c0_i32, %c0_i32_0 : i32, i32
  }
  func.func @transform_3(%arg0: i32) -> (i32, i32) {
    %c0_i32 = arith.constant 0 : i32
    %c0_i32_0 = arith.constant 0 : i32
    return %arg0, %c0_i32 : i32, i32
  }
}

module attributes {stable_mosaic.version = 11 : i64} {
  func.func @_boom_kernel(%arg0: i32, %arg1: memref<16x32xbf16, #tpu.memory_space<vmem>>, %arg2: memref<32x64xbf16, #tpu.memory_space<vmem>>, %arg3: memref<1x64xf32, #tpu.memory_space<vmem>>, %arg4: memref<16x32xbf16, #tpu.memory_space<vmem>>) attributes {dimension_semantics = [#tpu.dimension_semantics<parallel>], iteration_bounds = array<i64: 1>, scalar_prefetch = 0 : i64, scratch_operands = 0 : i64, tpu.core_type = #tpu.core_type<tc>, window_params = [{transform_indices = @transform_0, window_bounds = array<i64: 16, 32>}, {pipeline_mode = #tpu.pipeline_mode<synchronous>, transform_indices = @transform_1, window_bounds = array<i64: 32, 64>}, {pipeline_mode = #tpu.pipeline_mode<synchronous>, transform_indices = @transform_2, window_bounds = array<i64: 1, 64>}, {transform_indices = @transform_3, window_bounds = array<i64: 16, 32>}]} {
    %c0 = arith.constant 0 : index
    %c0_0 = arith.constant 0 : index
    %0 = vector.load %arg1[%c0, %c0_0] : memref<16x32xbf16, #tpu.memory_space<vmem>>, vector<16x32xbf16>
    %c0_1 = arith.constant 0 : index
    %c0_2 = arith.constant 0 : index
    %1 = vector.load %arg2[%c0_1, %c0_2] : memref<32x64xbf16, #tpu.memory_space<vmem>>, vector<32x64xbf16>
    %cst = arith.constant dense<0.000000e+00> : vector<16x64xf32>
    %2 = tpu.matmul %0, %1, %cst {dimension_numbers = #tpu.dot_dimension_numbers<[1], [0], [0], [1], [0, 0, 1, 1], [], []>} : vector<16x32xbf16>, vector<32x64xbf16>, vector<16x64xf32> -> vector<16x64xf32>
    %c0_3 = arith.constant 0 : index
    %c0_4 = arith.constant 0 : index
    %3 = vector.load %arg3[%c0_3, %c0_4] : memref<1x64xf32, #tpu.memory_space<vmem>>, vector<1x64xf32>
    %4 = vector.broadcast %3 : vector<1x64xf32> to vector<16x64xf32>
    %5 = arith.addf %2, %4 : vector<16x64xf32>
    %cst_5 = arith.constant 5.000000e-01 : f32
    %6 = vector.broadcast %cst_5 : f32 to vector<16x64xf32>
    %7 = arith.mulf %6, %5 : vector<16x64xf32>
    %cst_6 = arith.constant 4.471500e-02 : f32
    %8 = vector.broadcast %cst_6 : f32 to vector<16x64xf32>
    %9 = arith.mulf %8, %5 : vector<16x64xf32>
    %10 = arith.mulf %9, %5 : vector<16x64xf32>
    %11 = arith.mulf %10, %5 : vector<16x64xf32>
    %12 = arith.addf %5, %11 : vector<16x64xf32>
    %cst_7 = arith.constant 0.797884583 : f32
    %13 = vector.broadcast %cst_7 : f32 to vector<16x64xf32>
    %14 = arith.mulf %13, %12 : vector<16x64xf32>
    %15 = math.tanh %14 : vector<16x64xf32>
    %cst_8 = arith.constant 1.000000e+00 : f32
    %16 = vector.broadcast %cst_8 : f32 to vector<16x64xf32>
    %17 = arith.addf %16, %15 : vector<16x64xf32>
    %18 = arith.mulf %7, %17 : vector<16x64xf32>
    %19 = vector.extract_strided_slice %18 {offsets = [0, 0], sizes = [16, 32], strides = [1, 1]} : vector<16x64xf32> to vector<16x32xf32>
    %20 = vector.extract_strided_slice %18 {offsets = [0, 32], sizes = [16, 32], strides = [1, 1]} : vector<16x64xf32> to vector<16x32xf32>
    %21 = arith.addf %19, %20 : vector<16x32xf32>
    %22 = arith.extf %0 : vector<16x32xbf16> to vector<16x32xf32>
    %23 = arith.addf %22, %21 : vector<16x32xf32>
    %24 = arith.truncf %23 : vector<16x32xf32> to vector<16x32xbf16>
    %c0_9 = arith.constant 0 : index
    %c0_10 = arith.constant 0 : index
    %25 = vector.load %arg4[%c0_9, %c0_10] : memref<16x32xbf16, #tpu.memory_space<vmem>>, vector<16x32xbf16>
    tpu.vector_store %arg4[%c0_9, %c0_10], %24 {strides = array<i32>} : memref<16x32xbf16, #tpu.memory_space<vmem>>, vector<16x32xbf16>,
    return
  }
  func.func @transform_0(%arg0: i32) -> (i32, i32) {
    %c0_i32 = arith.constant 0 : i32
    %c0_i32_0 = arith.constant 0 : i32
    return %arg0, %c0_i32 : i32, i32
  }
  func.func @transform_1(%arg0: i32) -> (i32, i32) {
    %c0_i32 = arith.constant 0 : i32
    %c0_i32_0 = arith.constant 0 : i32
    %c0_i32_1 = arith.constant 0 : i32
    return %c0_i32, %c0_i32_0 : i32, i32
  }
  func.func @transform_2(%arg0: i32) -> (i32, i32) {
    %c0_i32 = arith.constant 0 : i32
    %c0_i32_0 = arith.constant 0 : i32
    %c0_i32_1 = arith.constant 0 : i32
    return %c0_i32, %c0_i32_0 : i32, i32
  }
  func.func @transform_3(%arg0: i32) -> (i32, i32) {
    %c0_i32 = arith.constant 0 : i32
    %c0_i32_0 = arith.constant 0 : i32
    return %arg0, %c0_i32 : i32, i32
  }
}

module attributes {stable_mosaic.version = 11 : i64} {
  func.func @_linear_kernel(%arg0: i32, %arg1: memref<16x32xbf16, #tpu.memory_space<vmem>>, %arg2: memref<32x64xbf16, #tpu.memory_space<vmem>>, %arg3: memref<1x64xf32, #tpu.memory_space<vmem>>, %arg4: memref<16x64xbf16, #tpu.memory_space<vmem>>) attributes {dimension_semantics = [#tpu.dimension_semantics<parallel>], iteration_bounds = array<i64: 1>, scalar_prefetch = 0 : i64, scratch_operands = 0 : i64, tpu.core_type = #tpu.core_type<tc>, window_params = [{transform_indices = @transform_0, window_bounds = array<i64: 16, 32>}, {pipeline_mode = #tpu.pipeline_mode<synchronous>, transform_indices = @transform_1, window_bounds = array<i64: 32, 64>}, {pipeline_mode = #tpu.pipeline_mode<synchronous>, transform_indices = @transform_2, window_bounds = array<i64: 1, 64>}, {transform_indices = @transform_3, window_bounds = array<i64: 16, 64>}]} {
    %c0 = arith.constant 0 : index
    %c0_0 = arith.constant 0 : index
    %0 = vector.load %arg1[%c0, %c0_0] : memref<16x32xbf16, #tpu.memory_space<vmem>>, vector<16x32xbf16>
    %c0_1 = arith.constant 0 : index
    %c0_2 = arith.constant 0 : index
    %1 = vector.load %arg2[%c0_1, %c0_2] : memref<32x64xbf16, #tpu.memory_space<vmem>>, vector<32x64xbf16>
    %cst = arith.constant dense<0.000000e+00> : vector<16x64xf32>
    %2 = tpu.matmul %0, %1, %cst {dimension_numbers = #tpu.dot_dimension_numbers<[1], [0], [0], [1], [0, 0, 1, 1], [], []>} : vector<16x32xbf16>, vector<32x64xbf16>, vector<16x64xf32> -> vector<16x64xf32>
    %c0_3 = arith.constant 0 : index
    %c0_4 = arith.constant 0 : index
    %3 = vector.load %arg3[%c0_3, %c0_4] : memref<1x64xf32, #tpu.memory_space<vmem>>, vector<1x64xf32>
    %4 = vector.broadcast %3 : vector<1x64xf32> to vector<16x64xf32>
    %5 = arith.addf %2, %4 : vector<16x64xf32>
    %6 = arith.truncf %5 : vector<16x64xf32> to vector<16x64xbf16>
    %c0_5 = arith.constant 0 : index
    %c0_6 = arith.constant 0 : index
    %7 = vector.load %arg4[%c0_5, %c0_6] : memref<16x64xbf16, #tpu.memory_space<vmem>>, vector<16x64xbf16>
    tpu.vector_store %arg4[%c0_5, %c0_6], %6 {strides = array<i32>} : memref<16x64xbf16, #tpu.memory_space<vmem>>, vector<16x64xbf16>,
    return
  }
  func.func @transform_0(%arg0: i32) -> (i32, i32) {
    %c0_i32 = arith.constant 0 : i32
    %c0_i32_0 = arith.constant 0 : i32
    return %arg0, %c0_i32 : i32, i32
  }
  func.func @transform_1(%arg0: i32) -> (i32, i32) {
    %c0_i32 = arith.constant 0 : i32
    %c0_i32_0 = arith.constant 0 : i32
    %c0_i32_1 = arith.constant 0 : i32
    return %c0_i32, %c0_i32_0 : i32, i32
  }
  func.func @transform_2(%arg0: i32) -> (i32, i32) {
    %c0_i32 = arith.constant 0 : i32
    %c0_i32_0 = arith.constant 0 : i32
    %c0_i32_1 = arith.constant 0 : i32
    return %c0_i32, %c0_i32_0 : i32, i32
  }
  func.func @transform_3(%arg0: i32) -> (i32, i32) {
    %c0_i32 = arith.constant 0 : i32
    %c0_i32_0 = arith.constant 0 : i32
    return %arg0, %c0_i32 : i32, i32
  }
}

module attributes {stable_mosaic.version = 11 : i64} {
  func.func @_linear_kernel(%arg0: i32, %arg1: memref<16x32xbf16, #tpu.memory_space<vmem>>, %arg2: memref<32x32xbf16, #tpu.memory_space<vmem>>, %arg3: memref<1x32xf32, #tpu.memory_space<vmem>>, %arg4: memref<16x32xbf16, #tpu.memory_space<vmem>>) attributes {dimension_semantics = [#tpu.dimension_semantics<parallel>], iteration_bounds = array<i64: 1>, scalar_prefetch = 0 : i64, scratch_operands = 0 : i64, tpu.core_type = #tpu.core_type<tc>, window_params = [{transform_indices = @transform_0, window_bounds = array<i64: 16, 32>}, {pipeline_mode = #tpu.pipeline_mode<synchronous>, transform_indices = @transform_1, window_bounds = array<i64: 32, 32>}, {pipeline_mode = #tpu.pipeline_mode<synchronous>, transform_indices = @transform_2, window_bounds = array<i64: 1, 32>}, {transform_indices = @transform_3, window_bounds = array<i64: 16, 32>}]} {
    %c0 = arith.constant 0 : index
    %c0_0 = arith.constant 0 : index
    %0 = vector.load %arg1[%c0, %c0_0] : memref<16x32xbf16, #tpu.memory_space<vmem>>, vector<16x32xbf16>
    %c0_1 = arith.constant 0 : index
    %c0_2 = arith.constant 0 : index
    %1 = vector.load %arg2[%c0_1, %c0_2] : memref<32x32xbf16, #tpu.memory_space<vmem>>, vector<32x32xbf16>
    %cst = arith.constant dense<0.000000e+00> : vector<16x32xf32>
    %2 = tpu.matmul %0, %1, %cst {dimension_numbers = #tpu.dot_dimension_numbers<[1], [0], [0], [1], [0, 0, 1, 1], [], []>} : vector<16x32xbf16>, vector<32x32xbf16>, vector<16x32xf32> -> vector<16x32xf32>
    %c0_3 = arith.constant 0 : index
    %c0_4 = arith.constant 0 : index
    %3 = vector.load %arg3[%c0_3, %c0_4] : memref<1x32xf32, #tpu.memory_space<vmem>>, vector<1x32xf32>
    %4 = vector.broadcast %3 : vector<1x32xf32> to vector<16x32xf32>
    %5 = arith.addf %2, %4 : vector<16x32xf32>
    %6 = arith.truncf %5 : vector<16x32xf32> to vector<16x32xbf16>
    %c0_5 = arith.constant 0 : index
    %c0_6 = arith.constant 0 : index
    %7 = vector.load %arg4[%c0_5, %c0_6] : memref<16x32xbf16, #tpu.memory_space<vmem>>, vector<16x32xbf16>
    tpu.vector_store %arg4[%c0_5, %c0_6], %6 {strides = array<i32>} : memref<16x32xbf16, #tpu.memory_space<vmem>>, vector<16x32xbf16>,
    return
  }
  func.func @transform_0(%arg0: i32) -> (i32, i32) {
    %c0_i32 = arith.constant 0 : i32
    %c0_i32_0 = arith.constant 0 : i32
    return %arg0, %c0_i32 : i32, i32
  }
  func.func @transform_1(%arg0: i32) -> (i32, i32) {
    %c0_i32 = arith.constant 0 : i32
    %c0_i32_0 = arith.constant 0 : i32
    %c0_i32_1 = arith.constant 0 : i32
    return %c0_i32, %c0_i32_0 : i32, i32
  }
  func.func @transform_2(%arg0: i32) -> (i32, i32) {
    %c0_i32 = arith.constant 0 : i32
    %c0_i32_0 = arith.constant 0 : i32
    %c0_i32_1 = arith.constant 0 : i32
    return %c0_i32, %c0_i32_0 : i32, i32
  }
  func.func @transform_3(%arg0: i32) -> (i32, i32) {
    %c0_i32 = arith.constant 0 : i32
    %c0_i32_0 = arith.constant 0 : i32
    return %arg0, %c0_i32 : i32, i32
  }
}

module attributes {stable_mosaic.version = 11 : i64} {
  func.func @_attn_kernel(%arg0: i32, %arg1: i32, %arg2: memref<4x8x16xbf16, #tpu.memory_space<vmem>>, %arg3: memref<4x8x16xbf16, #tpu.memory_space<vmem>>, %arg4: memref<4x8x16xbf16, #tpu.memory_space<vmem>>, %arg5: memref<4x8x16xbf16, #tpu.memory_space<vmem>>, %arg6: memref<4x8x1xf32, #tpu.memory_space<vmem>>, %arg7: memref<4x8x1xf32, #tpu.memory_space<vmem>>, %arg8: memref<4x8x16xf32, #tpu.memory_space<vmem>>) attributes {dimension_semantics = [#tpu.dimension_semantics<parallel>, #tpu.dimension_semantics<arbitrary>], iteration_bounds = array<i64: 1, 1>, scalar_prefetch = 0 : i64, scratch_operands = 3 : i64, tpu.core_type = #tpu.core_type<tc>, window_params = [{transform_indices = @transform_0, window_bounds = array<i64: 4, 8, 16>}, {transform_indices = @transform_1, window_bounds = array<i64: 4, 8, 16>}, {transform_indices = @transform_2, window_bounds = array<i64: 4, 8, 16>}, {transform_indices = @transform_3, window_bounds = array<i64: 4, 8, 16>}]} {
    %c0_i32 = arith.constant 0 : i32
    %0 = arith.cmpi eq, %arg1, %c0_i32 : i32
    %1 = arith.extui %0 : i1 to i32
    %c0_i32_0 = arith.constant 0 : i32
    %2 = arith.cmpi ne, %1, %c0_i32_0 : i32
    scf.if %2 {
      %cst = arith.constant 0xFF800000 : f32
      %12 = vector.broadcast %cst : f32 to vector<4x8x1xf32>
      %c0 = arith.constant 0 : index
      %c0_5 = arith.constant 0 : index
      %c0_6 = arith.constant 0 : index
      %13 = vector.load %arg6[%c0, %c0_5, %c0_6] : memref<4x8x1xf32, #tpu.memory_space<vmem>>, vector<4x8x1xf32>
      tpu.vector_store %arg6[%c0, %c0_5, %c0_6], %12 {strides = array<i32>} : memref<4x8x1xf32, #tpu.memory_space<vmem>>, vector<4x8x1xf32>,
      %cst_7 = arith.constant 0.000000e+00 : f32
      %14 = vector.broadcast %cst_7 : f32 to vector<4x8x1xf32>
      %c0_8 = arith.constant 0 : index
      %c0_9 = arith.constant 0 : index
      %c0_10 = arith.constant 0 : index
      %15 = vector.load %arg7[%c0_8, %c0_9, %c0_10] : memref<4x8x1xf32, #tpu.memory_space<vmem>>, vector<4x8x1xf32>
      tpu.vector_store %arg7[%c0_8, %c0_9, %c0_10], %14 {strides = array<i32>} : memref<4x8x1xf32, #tpu.memory_space<vmem>>, vector<4x8x1xf32>,
      %cst_11 = arith.constant 0.000000e+00 : f32
      %16 = vector.broadcast %cst_11 : f32 to vector<4x8x16xf32>
      %c0_12 = arith.constant 0 : index
      %c0_13 = arith.constant 0 : index
      %c0_14 = arith.constant 0 : index
      %17 = vector.load %arg8[%c0_12, %c0_13, %c0_14] : memref<4x8x16xf32, #tpu.memory_space<vmem>>, vector<4x8x16xf32>
      tpu.vector_store %arg8[%c0_12, %c0_13, %c0_14], %16 {strides = array<i32>} : memref<4x8x16xf32, #tpu.memory_space<vmem>>, vector<4x8x16xf32>,
    } else {
    }
    %c8_i32 = arith.constant 8 : i32
    %3 = arith.muli %arg0, %c8_i32 : i32
    %c7_i32 = arith.constant 7 : i32
    %4 = arith.addi %3, %c7_i32 : i32
    %c8_i32_1 = arith.constant 8 : i32
    %5 = arith.muli %arg1, %c8_i32_1 : i32
    %6 = arith.cmpi sge, %4, %5 : i32
    %7 = arith.extui %6 : i1 to i32
    %c0_i32_2 = arith.constant 0 : i32
    %8 = arith.cmpi ne, %7, %c0_i32_2 : i32
    scf.if %8 {
      %c0 = arith.constant 0 : index
      %c0_5 = arith.constant 0 : index
      %c0_6 = arith.constant 0 : index
      %12 = vector.load %arg2[%c0, %c0_5, %c0_6] : memref<4x8x16xbf16, #tpu.memory_space<vmem>>, vector<4x8x16xbf16>
      %c0_7 = arith.constant 0 : index
      %c0_8 = arith.constant 0 : index
      %c0_9 = arith.constant 0 : index
      %13 = vector.load %arg3[%c0_7, %c0_8, %c0_9] : memref<4x8x16xbf16, #tpu.memory_space<vmem>>, vector<4x8x16xbf16>
      %c0_10 = arith.constant 0 : index
      %c0_11 = arith.constant 0 : index
      %c0_12 = arith.constant 0 : index
      %14 = vector.load %arg4[%c0_10, %c0_11, %c0_12] : memref<4x8x16xbf16, #tpu.memory_space<vmem>>, vector<4x8x16xbf16>
      "tpu.trace_start"() <{level = 10 : i32, message = "bqd,bkd->bqk"}> : () -> ()
      %cst = arith.constant dense<0.000000e+00> : vector<4x8x8xf32>
      %15 = tpu.matmul %12, %13, %cst {dimension_numbers = #tpu.dot_dimension_numbers<[2], [2], [1], [1], [0, 0, 0, 1, 1, 1], [0], [0]>} : vector<4x8x16xbf16>, vector<4x8x16xbf16>, vector<4x8x8xf32> -> vector<4x8x8xf32>
      "tpu.trace_stop"() : () -> ()
      %cst_13 = arith.constant 2.500000e-01 : f32
      %16 = vector.broadcast %cst_13 : f32 to vector<4x8x8xf32>
      %17 = arith.mulf %15, %16 : vector<4x8x8xf32>
      %c8_i32_14 = arith.constant 8 : i32
      %18 = arith.muli %arg0, %c8_i32_14 : i32
      %19 = tpu.iota {dimensions = array<i32: 0>} : vector<8x8xi32>
      %20 = vector.broadcast %18 : i32 to vector<8x8xi32>
      %21 = arith.addi %20, %19 : vector<8x8xi32>
      %c8_i32_15 = arith.constant 8 : i32
      %22 = arith.muli %arg1, %c8_i32_15 : i32
      %23 = tpu.iota {dimensions = array<i32: 1>} : vector<8x8xi32>
      %24 = vector.broadcast %22 : i32 to vector<8x8xi32>
      %25 = arith.addi %24, %23 : vector<8x8xi32>
      %26 = arith.cmpi sgt, %25, %21 : vector<8x8xi32>
      %cst_16 = arith.constant -1.000000e+30 : f32
      %cst_17 = arith.constant 0.000000e+00 : f32
      %27 = vector.broadcast %cst_16 : f32 to vector<8x8xf32>
      %28 = vector.broadcast %cst_17 : f32 to vector<8x8xf32>
      %29 = arith.select %26, %27, %28 : vector<8x8xi1>, vector<8x8xf32>
      %30 = vector.shape_cast %29 : vector<8x8xf32> to vector<1x8x8xf32>
      %31 = vector.broadcast %30 : vector<1x8x8xf32> to vector<4x8x8xf32>
      %32 = arith.addf %17, %31 : vector<4x8x8xf32>
      %c0_18 = arith.constant 0 : index
      %c0_19 = arith.constant 0 : index
      %c0_20 = arith.constant 0 : index
      %33 = vector.load %arg6[%c0_18, %c0_19, %c0_20] : memref<4x8x1xf32, #tpu.memory_space<vmem>>, vector<4x8x1xf32>
      %cst_21 = arith.constant dense<0xFF800000> : vector<4x8xf32>
      %34 = vector.multi_reduction <maximumf>, %32, %cst_21 [2] : vector<4x8x8xf32> to vector<4x8xf32>
      %35 = vector.shape_cast %34 : vector<4x8xf32> to vector<4x8x1xf32>
      %36 = arith.maximumf %33, %35 : vector<4x8x1xf32>
      %c0_22 = arith.constant 0 : index
      %c0_23 = arith.constant 0 : index
      %c0_24 = arith.constant 0 : index
      %37 = vector.load %arg6[%c0_22, %c0_23, %c0_24] : memref<4x8x1xf32, #tpu.memory_space<vmem>>, vector<4x8x1xf32>
      %38 = arith.subf %37, %36 : vector<4x8x1xf32>
      %39 = math.exp %38 : vector<4x8x1xf32>
      %40 = vector.broadcast %36 : vector<4x8x1xf32> to vector<4x8x8xf32>
      %41 = arith.subf %32, %40 : vector<4x8x8xf32>
      %42 = math.exp %41 : vector<4x8x8xf32>
      %c0_25 = arith.constant 0 : index
      %c0_26 = arith.constant 0 : index
      %c0_27 = arith.constant 0 : index
      %43 = vector.load %arg7[%c0_25, %c0_26, %c0_27] : memref<4x8x1xf32, #tpu.memory_space<vmem>>, vector<4x8x1xf32>
      %44 = arith.mulf %39, %43 : vector<4x8x1xf32>
      %cst_28 = arith.constant dense<0.000000e+00> : vector<4x8xf32>
      %45 = vector.multi_reduction <add>, %42, %cst_28 [2] : vector<4x8x8xf32> to vector<4x8xf32>
      %46 = vector.shape_cast %45 : vector<4x8xf32> to vector<4x8x1xf32>
      %47 = arith.addf %44, %46 : vector<4x8x1xf32>
      %c0_29 = arith.constant 0 : index
      %c0_30 = arith.constant 0 : index
      %c0_31 = arith.constant 0 : index
      %48 = vector.load %arg7[%c0_29, %c0_30, %c0_31] : memref<4x8x1xf32, #tpu.memory_space<vmem>>, vector<4x8x1xf32>
      tpu.vector_store %arg7[%c0_29, %c0_30, %c0_31], %47 {strides = array<i32>} : memref<4x8x1xf32, #tpu.memory_space<vmem>>, vector<4x8x1xf32>,
      %c0_32 = arith.constant 0 : index
      %c0_33 = arith.constant 0 : index
      %c0_34 = arith.constant 0 : index
      %49 = vector.load %arg8[%c0_32, %c0_33, %c0_34] : memref<4x8x16xf32, #tpu.memory_space<vmem>>, vector<4x8x16xf32>
      %50 = vector.broadcast %39 : vector<4x8x1xf32> to vector<4x8x16xf32>
      %51 = arith.mulf %50, %49 : vector<4x8x16xf32>
      %52 = arith.truncf %42 : vector<4x8x8xf32> to vector<4x8x8xbf16>
      "tpu.trace_start"() <{level = 10 : i32, message = "bqk,bkd->bqd"}> : () -> ()
      %cst_35 = arith.constant dense<0.000000e+00> : vector<4x8x16xf32>
      %53 = tpu.matmul %52, %14, %cst_35 {dimension_numbers = #tpu.dot_dimension_numbers<[2], [1], [1], [2], [0, 0, 0, 1, 1, 2], [0], [0]>} : vector<4x8x8xbf16>, vector<4x8x16xbf16>, vector<4x8x16xf32> -> vector<4x8x16xf32>
      "tpu.trace_stop"() : () -> ()
      %54 = arith.addf %51, %53 : vector<4x8x16xf32>
      %c0_36 = arith.constant 0 : index
      %c0_37 = arith.constant 0 : index
      %c0_38 = arith.constant 0 : index
      %55 = vector.load %arg8[%c0_36, %c0_37, %c0_38] : memref<4x8x16xf32, #tpu.memory_space<vmem>>, vector<4x8x16xf32>
      tpu.vector_store %arg8[%c0_36, %c0_37, %c0_38], %54 {strides = array<i32>} : memref<4x8x16xf32, #tpu.memory_space<vmem>>, vector<4x8x16xf32>,
      %c0_39 = arith.constant 0 : index
      %c0_40 = arith.constant 0 : index
      %c0_41 = arith.constant 0 : index
      %56 = vector.load %arg6[%c0_39, %c0_40, %c0_41] : memref<4x8x1xf32, #tpu.memory_space<vmem>>, vector<4x8x1xf32>
      tpu.vector_store %arg6[%c0_39, %c0_40, %c0_41], %36 {strides = array<i32>} : memref<4x8x1xf32, #tpu.memory_space<vmem>>, vector<4x8x1xf32>,
    } else {
    }
    %c0_i32_3 = arith.constant 0 : i32
    %9 = arith.cmpi eq, %arg1, %c0_i32_3 : i32
    %10 = arith.extui %9 : i1 to i32
    %c0_i32_4 = arith.constant 0 : i32
    %11 = arith.cmpi ne, %10, %c0_i32_4 : i32
    scf.if %11 {
      %c0 = arith.constant 0 : index
      %c0_5 = arith.constant 0 : index
      %c0_6 = arith.constant 0 : index
      %12 = vector.load %arg8[%c0, %c0_5, %c0_6] : memref<4x8x16xf32, #tpu.memory_space<vmem>>, vector<4x8x16xf32>
      %c0_7 = arith.constant 0 : index
      %c0_8 = arith.constant 0 : index
      %c0_9 = arith.constant 0 : index
      %13 = vector.load %arg7[%c0_7, %c0_8, %c0_9] : memref<4x8x1xf32, #tpu.memory_space<vmem>>, vector<4x8x1xf32>
      %14 = tpu.reciprocal %13 {approx = true} : vector<4x8x1xf32> -> vector<4x8x1xf32>
      %15 = vector.broadcast %14 : vector<4x8x1xf32> to vector<4x8x16xf32>
      %16 = arith.mulf %12, %15 : vector<4x8x16xf32>
      %17 = arith.truncf %16 : vector<4x8x16xf32> to vector<4x8x16xbf16>
      %c0_10 = arith.constant 0 : index
      %c0_11 = arith.constant 0 : index
      %c0_12 = arith.constant 0 : index
      %18 = vector.load %arg5[%c0_10, %c0_11, %c0_12] : memref<4x8x16xbf16, #tpu.memory_space<vmem>>, vector<4x8x16xbf16>
      tpu.vector_store %arg5[%c0_10, %c0_11, %c0_12], %17 {strides = array<i32>} : memref<4x8x16xbf16, #tpu.memory_space<vmem>>, vector<4x8x16xbf16>,
    } else {
    }
    return
  }
  func.func @transform_0(%arg0: i32, %arg1: i32) -> (i32, i32, i32) {
    %c0_i32 = arith.constant 0 : i32
    %c0_i32_0 = arith.constant 0 : i32
    %c0_i32_1 = arith.constant 0 : i32
    return %c0_i32, %arg0, %c0_i32_0 : i32, i32, i32
  }
  func.func @transform_1(%arg0: i32, %arg1: i32) -> (i32, i32, i32) {
    %c0_i32 = arith.constant 0 : i32
    %c0_i32_0 = arith.constant 0 : i32
    %c0_i32_1 = arith.constant 0 : i32
    return %c0_i32, %arg1, %c0_i32_0 : i32, i32, i32
  }
  func.func @transform_2(%arg0: i32, %arg1: i32) -> (i32, i32, i32) {
    %c0_i32 = arith.constant 0 : i32
    %c0_i32_0 = arith.constant 0 : i32
    %c0_i32_1 = arith.constant 0 : i32
    return %c0_i32, %arg1, %c0_i32_0 : i32, i32, i32
  }
  func.func @transform_3(%arg0: i32, %arg1: i32) -> (i32, i32, i32) {
    %c0_i32 = arith.constant 0 : i32
    %c0_i32_0 = arith.constant 0 : i32
    %c0_i32_1 = arith.constant 0 : i32
    return %c0_i32, %arg0, %c0_i32_0 : i32, i32, i32
  }
}

module attributes {stable_mosaic.version = 11 : i64} {
  func.func @_linear_res_kernel(%arg0: i32, %arg1: memref<16x32xbf16, #tpu.memory_space<vmem>>, %arg2: memref<32x32xbf16, #tpu.memory_space<vmem>>, %arg3: memref<1x32xf32, #tpu.memory_space<vmem>>, %arg4: memref<16x32xbf16, #tpu.memory_space<vmem>>, %arg5: memref<16x32xbf16, #tpu.memory_space<vmem>>) attributes {dimension_semantics = [#tpu.dimension_semantics<parallel>], iteration_bounds = array<i64: 1>, scalar_prefetch = 0 : i64, scratch_operands = 0 : i64, tpu.core_type = #tpu.core_type<tc>, window_params = [{transform_indices = @transform_0, window_bounds = array<i64: 16, 32>}, {pipeline_mode = #tpu.pipeline_mode<synchronous>, transform_indices = @transform_1, window_bounds = array<i64: 32, 32>}, {pipeline_mode = #tpu.pipeline_mode<synchronous>, transform_indices = @transform_2, window_bounds = array<i64: 1, 32>}, {transform_indices = @transform_3, window_bounds = array<i64: 16, 32>}, {transform_indices = @transform_4, window_bounds = array<i64: 16, 32>}]} {
    %c0 = arith.constant 0 : index
    %c0_0 = arith.constant 0 : index
    %0 = vector.load %arg1[%c0, %c0_0] : memref<16x32xbf16, #tpu.memory_space<vmem>>, vector<16x32xbf16>
    %c0_1 = arith.constant 0 : index
    %c0_2 = arith.constant 0 : index
    %1 = vector.load %arg2[%c0_1, %c0_2] : memref<32x32xbf16, #tpu.memory_space<vmem>>, vector<32x32xbf16>
    %cst = arith.constant dense<0.000000e+00> : vector<16x32xf32>
    %2 = tpu.matmul %0, %1, %cst {dimension_numbers = #tpu.dot_dimension_numbers<[1], [0], [0], [1], [0, 0, 1, 1], [], []>} : vector<16x32xbf16>, vector<32x32xbf16>, vector<16x32xf32> -> vector<16x32xf32>
    %c0_3 = arith.constant 0 : index
    %c0_4 = arith.constant 0 : index
    %3 = vector.load %arg3[%c0_3, %c0_4] : memref<1x32xf32, #tpu.memory_space<vmem>>, vector<1x32xf32>
    %4 = vector.broadcast %3 : vector<1x32xf32> to vector<16x32xf32>
    %5 = arith.addf %2, %4 : vector<16x32xf32>
    %c0_5 = arith.constant 0 : index
    %c0_6 = arith.constant 0 : index
    %6 = vector.load %arg4[%c0_5, %c0_6] : memref<16x32xbf16, #tpu.memory_space<vmem>>, vector<16x32xbf16>
    %7 = arith.extf %6 : vector<16x32xbf16> to vector<16x32xf32>
    %8 = arith.addf %5, %7 : vector<16x32xf32>
    %9 = arith.truncf %8 : vector<16x32xf32> to vector<16x32xbf16>
    %c0_7 = arith.constant 0 : index
    %c0_8 = arith.constant 0 : index
    %10 = vector.load %arg5[%c0_7, %c0_8] : memref<16x32xbf16, #tpu.memory_space<vmem>>, vector<16x32xbf16>
    tpu.vector_store %arg5[%c0_7, %c0_8], %9 {strides = array<i32>} : memref<16x32xbf16, #tpu.memory_space<vmem>>, vector<16x32xbf16>,
    return
  }
  func.func @transform_0(%arg0: i32) -> (i32, i32) {
    %c0_i32 = arith.constant 0 : i32
    %c0_i32_0 = arith.constant 0 : i32
    return %arg0, %c0_i32 : i32, i32
  }
  func.func @transform_1(%arg0: i32) -> (i32, i32) {
    %c0_i32 = arith.constant 0 : i32
    %c0_i32_0 = arith.constant 0 : i32
    %c0_i32_1 = arith.constant 0 : i32
    return %c0_i32, %c0_i32_0 : i32, i32
  }
  func.func @transform_2(%arg0: i32) -> (i32, i32) {
    %c0_i32 = arith.constant 0 : i32
    %c0_i32_0 = arith.constant 0 : i32
    %c0_i32_1 = arith.constant 0 : i32
    return %c0_i32, %c0_i32_0 : i32, i32
  }
  func.func @transform_3(%arg0: i32) -> (i32, i32) {
    %c0_i32 = arith.constant 0 : i32
    %c0_i32_0 = arith.constant 0 : i32
    return %arg0, %c0_i32 : i32, i32
  }
  func.func @transform_4(%arg0: i32) -> (i32, i32) {
    %c0_i32 = arith.constant 0 : i32
    %c0_i32_0 = arith.constant 0 : i32
    return %arg0, %c0_i32 : i32, i32
  }
}

</mosaic_0001>

<llo_original>
// kernel: sharnn_forward.14
$region0: #{sharnn_forward.14}
  #allocation0 [shape = 'u32[]', space=smem, size = 0x4, offset = 0x4, fixed_abs, tag = 'smem constant byte address 0x4 - core index']
  #allocation1 [shape = 'u32[72,128]{1,0:T(1,128)}', space=vmem, size = 0x9000, scoped, tag = 'internal scratch']
  %s0 = inlined_call_operand.vmem [shape: bf16[16,32], index: 0, kind: input, shape index: {}]
  %s1 = inlined_call_operand.vmem [shape: bf16[32,128], index: 1, kind: input, shape index: {}]
  %s2 = inlined_call_operand.vmem [shape: f32[1,128], index: 2, kind: input, shape index: {}]
  %s3 = inlined_call_operand.vmem [shape: f32[16,128], index: 3, kind: output, shape index: {}]
  %s4 = sld [smem:[#allocation0]]
  $region22: #{sharnn_forward.14} parent=0
    _
  %s6 = ssub.s32 1, %s4
  %s7 = scalar_select 0, %s6, %s4
  // Predicated region
  $region2: #{sharnn_forward.14} parent=0 // pred_check
    _
  $region3: #{sharnn_forward.14} parent=0 // pred_check_branch
    %9 = sbr.rel (0) target = $region5
  $region4: #{sharnn_forward.14} parent=0 // pred_region
    _
  $region5: #{sharnn_forward.14} parent=0 // pred_fallthru
    _
  // Predicated region
  $region6: #{sharnn_forward.14} parent=0 // pred_check
    _
  $region7: #{sharnn_forward.14} parent=0 // pred_check_branch
    %11 = sbr.rel (0) target = $region9
  $region8: #{sharnn_forward.14} parent=0 // pred_region
    _
  $region9: #{sharnn_forward.14} parent=0 // pred_fallthru
    _
  // Predicated region
  $region10: #{sharnn_forward.14} parent=0 // pred_check
    _
  $region11: #{sharnn_forward.14} parent=0 // pred_check_branch
    %13 = sbr.rel (0) target = $region13
  $region12: #{sharnn_forward.14} parent=0 // pred_region
    _
  $region13: #{sharnn_forward.14} parent=0 // pred_fallthru
    _
  %v15 = vld [vmem:[%s0] sm:$0xf]
  %v16 = vld [vmem:[%s0 + $0x4] sm:$0xf]
  %v17 = vld [vmem:[%s1] sm:$0xf]
  %v18 = vld [vmem:[%s1 + $0x4] sm:$0xf]
  %v19 = vld [vmem:[%s1 + $0x8] sm:$0xf]
  %v20 = vld [vmem:[%s1 + $0xc] sm:$0xf]
  %v21 = vld [vmem:[%s2] sm:$0x1]
  %v23 = vperm.slane %v21, 0
  %v27 = vunpack.c.l.b16 %v15
  %v28 = vunpack.c.l.b16 %v16
  %v29 = vpack.c.b16 %v28, %v27
  %v34 = vunpack.c.l.b16 %v17
  %v35 = vunpack.c.l.b16 %v18
  %v36 = vunpack.c.l.b16 %v19
  %v37 = vunpack.c.l.b16 %v20
  %v38 = vpack.c.b16 %v35, %v34
  %v39 = vpack.c.b16 %v37, %v36
  %vm42 = vcmask 261120
  %v44 = vsel %vm42, %v29, 0
  %46 = vmatpush.bf16.msra.mxu0 0
  %47 = vmatpush.bf16.msra.mxu0 0
  %48 = vmatpush.bf16.msra.mxu0 0
  %49 = vmatpush.bf16.msra.mxu0 0
  %50 = vmatpush.bf16.msra.mxu0 0
  %51 = vmatpush.bf16.msra.mxu0 0
  %52 = vmatpush.bf16.msra.mxu0 %v39
  %53 = vmatpush.bf16.msra.mxu0 %v38
  %54 = vmatmul.bf16.gmra.mxu0 %v44
  %v55 = vpop.f32.mrf.mxu0
  %v56 = vadd.f32 %v23, %v55
  %v57 = vpop.f32.mrf.mxu0
  %v58 = vadd.f32 %v23, %v57
  %59 = vdwg.mxu0
  %60 = vst [vmem:[%s3] sm:$0xff] %v56
  %61 = vst [vmem:[%s3 + $0x8] sm:$0xff] %v58
  // Predicated region
  $region14: #{sharnn_forward.14} parent=0 // pred_check
    _
  $region15: #{sharnn_forward.14} parent=0 // pred_check_branch
    %63 = sbr.rel (0) target = $region17
  $region16: #{sharnn_forward.14} parent=0 // pred_region
    _
  $region17: #{sharnn_forward.14} parent=0 // pred_fallthru
    _
  // Predicated region
  $region18: #{sharnn_forward.14} parent=0 // pred_check
    _
  $region19: #{sharnn_forward.14} parent=0 // pred_check_branch
    %65 = sbr.rel (0) target = $region21
  $region20: #{sharnn_forward.14} parent=0 // pred_region
    _
  $region21: #{sharnn_forward.14} parent=0 // pred_fallthru
    _

// kernel: sharnn_forward.19
$region0: #{sharnn_forward.19}
  #allocation0 [shape = 'u32[]', space=smem, size = 0x4, offset = 0x4, fixed_abs, tag = 'smem constant byte address 0x4 - core index']
  #allocation1 [shape = 'u32[72,128]{1,0:T(1,128)}', space=vmem, size = 0x9000, scoped, tag = 'internal scratch']
  %s0 = inlined_call_operand.vmem [shape: bf16[16,32], index: 0, kind: input, shape index: {}]
  %s1 = inlined_call_operand.vmem [shape: f32[1,32], index: 1, kind: input, shape index: {}]
  %s2 = inlined_call_operand.vmem [shape: f32[1,32], index: 2, kind: input, shape index: {}]
  %s3 = inlined_call_operand.vmem [shape: bf16[16,32], index: 3, kind: output, shape index: {}]
  %s4 = sld [smem:[#allocation0]]
  $region22: #{sharnn_forward.19} parent=0
    _
  %s6 = ssub.s32 1, %s4
  %s7 = scalar_select 0, %s6, %s4
  // Predicated region
  $region2: #{sharnn_forward.19} parent=0 // pred_check
    _
  $region3: #{sharnn_forward.19} parent=0 // pred_check_branch
    %9 = sbr.rel (0) target = $region5
  $region4: #{sharnn_forward.19} parent=0 // pred_region
    _
  $region5: #{sharnn_forward.19} parent=0 // pred_fallthru
    _
  // Predicated region
  $region6: #{sharnn_forward.19} parent=0 // pred_check
    _
  $region7: #{sharnn_forward.19} parent=0 // pred_check_branch
    %11 = sbr.rel (0) target = $region9
  $region8: #{sharnn_forward.19} parent=0 // pred_region
    _
  $region9: #{sharnn_forward.19} parent=0 // pred_fallthru
    _
  // Predicated region
  $region10: #{sharnn_forward.19} parent=0 // pred_check
    _
  $region11: #{sharnn_forward.19} parent=0 // pred_check_branch
    %13 = sbr.rel (0) target = $region13
  $region12: #{sharnn_forward.19} parent=0 // pred_region
    _
  $region13: #{sharnn_forward.19} parent=0 // pred_fallthru
    _
  %v14 = vld [vmem:[%s0] sm:$0xf]
  %v15 = vld [vmem:[%s0 + $0x4] sm:$0xf]
  %v16 = vunpack.c.l.bf16 %v14
  %v17 = vunpack.c.l.bf16 %v15
  %vm18 = vcmask 261120
  %v19 = vsel %vm18, %v16, 0.0
  %20 = vadd.xlane.f32.xlu0 %v19
  %v21 = vpop.xlane.xlu0 %20
  %v22 = vsel %vm18, %v17, 0.0
  %23 = vadd.xlane.f32.xlu0 %v22
  %v24 = vpop.xlane.xlu0 %23
  %v25 = vrcp.pop 32.0
  %v26 = vmul.f32 32.0, %v25
  %v27 = vsub.f32 1.0, %v26
  %v28 = vmul.f32 %v25, %v27
  %v29 = vadd.f32 %v25, %v28
  %vm30 = vweird.f32 %v25
  %v31 = vsel %vm30, %v25, %v29
  %v32 = vmul.f32 %v21, %v31
  %v33 = vmul.f32 %v24, %v31
  %v34 = vsub.f32 %v16, %v32
  %v35 = vsub.f32 %v17, %v33
  %v36 = vmul.f32 %v34, %v34
  %v37 = vmul.f32 %v35, %v35
  %v38 = vsel %vm18, %v36, 0.0
  %39 = vadd.xlane.f32.xlu0 %v38
  %v40 = vpop.xlane.xlu0 %39
  %v41 = vsel %vm18, %v37, 0.0
  %42 = vadd.xlane.f32.xlu0 %v41
  %v43 = vpop.xlane.xlu0 %42
  %v44 = vmul.f32 %v40, %v31
  %v45 = vmul.f32 %v43, %v31
  %v46 = vadd.f32 %v44, 1e-12
  %v47 = vadd.f32 %v45, 1e-12
  %v48 = vrsqrt.pop %v46
  %v49 = vmul.f32 %v48, %v46
  %v50 = vmul.f32 %v49, %v48
  %v51 = vmul.f32 0.5, %v50
  %v52 = vsub.f32 1.5, %v51
  %v53 = vmul.f32 %v48, %v52
  %vm54 = vweird.f32 %v46
  %vm55 = vweird.f32 %v48
  %vm56 = vmor %vm54, %vm55
  %v57 = vsel %vm56, %v48, %v53
  %v58 = vrsqrt.pop %v47
  %v59 = vmul.f32 %v58, %v47
  %v60 = vmul.f32 %v59, %v58
  %v61 = vmul.f32 0.5, %v60
  %v62 = vsub.f32 1.5, %v61
  %v63 = vmul.f32 %v58, %v62
  %vm64 = vweird.f32 %v47
  %vm65 = vweird.f32 %v58
  %vm66 = vmor %vm64, %vm65
  %v67 = vsel %vm66, %v58, %v63
  %v68 = vmul.f32 %v34, %v57
  %v69 = vmul.f32 %v35, %v67
  %v70 = vld [vmem:[%s1] sm:$0x1]
  %v72 = vperm.slane %v70, 0
  %v74 = vmul.f32 %v68, %v72
  %v75 = vmul.f32 %v69, %v72
  %v76 = vld [vmem:[%s2] sm:$0x1]
  %v78 = vperm.slane %v76, 0
  %v80 = vadd.f32 %v74, %v78
  %v81 = vadd.f32 %v75, %v78
  %v82 = vpack.c.bf16 %v80, %v80
  %v83 = vpack.c.bf16 %v81, %v81
  %vm84 = vcmask 257024
  %85 = vst.msk [vmem:[%s3] sm:$0xf] %vm84, %v82
  %86 = vst.msk [vmem:[%s3 + $0x4] sm:$0xf] %vm84, %v83
  // Predicated region
  $region14: #{sharnn_forward.19} parent=0 // pred_check
    _
  $region15: #{sharnn_forward.19} parent=0 // pred_check_branch
    %88 = sbr.rel (0) target = $region17
  $region16: #{sharnn_forward.19} parent=0 // pred_region
    _
  $region17: #{sharnn_forward.19} parent=0 // pred_fallthru
    _
  // Predicated region
  $region18: #{sharnn_forward.19} parent=0 // pred_check
    _
  $region19: #{sharnn_forward.19} parent=0 // pred_check_branch
    %90 = sbr.rel (0) target = $region21
  $region20: #{sharnn_forward.19} parent=0 // pred_region
    _
  $region21: #{sharnn_forward.19} parent=0 // pred_fallthru
    _

// kernel: sharnn_forward.16
$region0: #{sharnn_forward.16}
  #allocation0 [shape = 'u32[]', space=smem, size = 0x4, offset = 0x4, fixed_abs, tag = 'smem constant byte address 0x4 - core index']
  #allocation1 [shape = 'u32[72,128]{1,0:T(1,128)}', space=vmem, size = 0x9000, scoped, tag = 'internal scratch']
  %s0 = inlined_call_operand.vmem [shape: bf16[16,32], index: 0, kind: input, shape index: {}]
  %s1 = inlined_call_operand.vmem [shape: bf16[32,64], index: 1, kind: input, shape index: {}]
  %s2 = inlined_call_operand.vmem [shape: f32[1,64], index: 2, kind: input, shape index: {}]
  %s3 = inlined_call_operand.vmem [shape: bf16[16,32], index: 3, kind: output, shape index: {}]
  %s4 = sld [smem:[#allocation0]]
  $region22: #{sharnn_forward.16} parent=0
    _
  %s6 = ssub.s32 1, %s4
  %s7 = scalar_select 0, %s6, %s4
  // Predicated region
  $region2: #{sharnn_forward.16} parent=0 // pred_check
    _
  $region3: #{sharnn_forward.16} parent=0 // pred_check_branch
    %9 = sbr.rel (0) target = $region5
  $region4: #{sharnn_forward.16} parent=0 // pred_region
    _
  $region5: #{sharnn_forward.16} parent=0 // pred_fallthru
    _
  // Predicated region
  $region6: #{sharnn_forward.16} parent=0 // pred_check
    _
  $region7: #{sharnn_forward.16} parent=0 // pred_check_branch
    %11 = sbr.rel (0) target = $region9
  $region8: #{sharnn_forward.16} parent=0 // pred_region
    _
  $region9: #{sharnn_forward.16} parent=0 // pred_fallthru
    _
  // Predicated region
  $region10: #{sharnn_forward.16} parent=0 // pred_check
    _
  $region11: #{sharnn_forward.16} parent=0 // pred_check_branch
    %13 = sbr.rel (0) target = $region13
  $region12: #{sharnn_forward.16} parent=0 // pred_region
    _
  $region13: #{sharnn_forward.16} parent=0 // pred_fallthru
    _
  %v15 = vld [vmem:[%s0] sm:$0xf]
  %v16 = vld [vmem:[%s0 + $0x4] sm:$0xf]
  %v17 = vld [vmem:[%s1] sm:$0xf]
  %v18 = vld [vmem:[%s1 + $0x4] sm:$0xf]
  %v19 = vld [vmem:[%s1 + $0x8] sm:$0xf]
  %v20 = vld [vmem:[%s1 + $0xc] sm:$0xf]
  %v21 = vld [vmem:[%s2] sm:$0x1]
  %v23 = vperm.slane %v21, 0
  %v27 = vunpack.c.l.b16 %v15
  %v28 = vunpack.c.l.b16 %v16
  %v29 = vpack.c.b16 %v28, %v27
  %v34 = vunpack.c.l.b16 %v17
  %v35 = vunpack.c.l.b16 %v18
  %v36 = vunpack.c.l.b16 %v19
  %v37 = vunpack.c.l.b16 %v20
  %v38 = vpack.c.b16 %v35, %v34
  %v39 = vpack.c.b16 %v37, %v36
  %vm42 = vcmask 261120
  %v44 = vsel %vm42, %v29, 0
  %46 = vmatpush.bf16.msra.mxu0 0
  %47 = vmatpush.bf16.msra.mxu0 0
  %48 = vmatpush.bf16.msra.mxu0 0
  %49 = vmatpush.bf16.msra.mxu0 0
  %50 = vmatpush.bf16.msra.mxu0 0
  %51 = vmatpush.bf16.msra.mxu0 0
  %52 = vmatpush.bf16.msra.mxu0 %v39
  %53 = vmatpush.bf16.msra.mxu0 %v38
  %54 = vmatmul.bf16.gmra.mxu0 %v44
  %v55 = vpop.f32.mrf.mxu0
  %v56 = vadd.f32 %v23, %v55
  %v57 = vpop.f32.mrf.mxu0
  %v58 = vadd.f32 %v23, %v57
  %59 = vdwg.mxu0
  %v60 = vmul.f32 %v56, 0.5
  %v61 = vmul.f32 %v58, 0.5
  %v62 = vmul.f32 %v56, 0.044715
  %v63 = vmul.f32 %v58, 0.044715
  %v64 = vmul.f32 %v62, %v56
  %v65 = vmul.f32 %v63, %v58
  %v66 = vmul.f32 %v64, %v56
  %v67 = vmul.f32 %v65, %v58
  %v68 = vadd.f32 %v56, %v66
  %v69 = vadd.f32 %v58, %v67
  %v70 = vmul.f32 %v68, 0.7978846
  %v71 = vmul.f32 %v69, 0.7978846
  %v72 = vtanh.pop %v70
  %v73 = vtanh.pop %v71
  %v74 = vadd.f32 %v72, 1.0
  %v75 = vadd.f32 %v73, 1.0
  %v76 = vmul.f32 %v60, %v74
  %v77 = vmul.f32 %v61, %v75
  %80 = vrot.lane.b32.xlu0 %v76, 96
  %v81 = vpop.permute.xlu0 %80
  %82 = vrot.lane.b32.xlu0 %v77, 96
  %v83 = vpop.permute.xlu0 %82
  %v86 = vadd.f32 %v76, %v81
  %v87 = vadd.f32 %v77, %v83
  %v88 = vunpack.c.l.bf16 %v15
  %v89 = vunpack.c.l.bf16 %v16
  %v90 = vadd.f32 %v88, %v86
  %v91 = vadd.f32 %v89, %v87
  %v92 = vpack.c.bf16 %v90, %v90
  %v93 = vpack.c.bf16 %v91, %v91
  %vm94 = vcmask 257024
  %95 = vst.msk [vmem:[%s3] sm:$0xf] %vm94, %v92
  %96 = vst.msk [vmem:[%s3 + $0x4] sm:$0xf] %vm94, %v93
  // Predicated region
  $region14: #{sharnn_forward.16} parent=0 // pred_check
    _
  $region15: #{sharnn_forward.16} parent=0 // pred_check_branch
    %98 = sbr.rel (0) target = $region17
  $region16: #{sharnn_forward.16} parent=0 // pred_region
    _
  $region17: #{sharnn_forward.16} parent=0 // pred_fallthru
    _
  // Predicated region
  $region18: #{sharnn_forward.16} parent=0 // pred_check
    _
  $region19: #{sharnn_forward.16} parent=0 // pred_check_branch
    %100 = sbr.rel (0) target = $region21
  $region20: #{sharnn_forward.16} parent=0 // pred_region
    _
  $region21: #{sharnn_forward.16} parent=0 // pred_fallthru
    _

// kernel: sharnn_forward.15
$region0: #{sharnn_forward.15}
  #allocation0 [shape = 'u32[]', space=smem, size = 0x4, offset = 0x4, fixed_abs, tag = 'smem constant byte address 0x4 - core index']
  #allocation1 [shape = 'u32[72,128]{1,0:T(1,128)}', space=vmem, size = 0x9000, scoped, tag = 'internal scratch']
  #allocation2 [shape = 'f32[2,32]{1,0:T(2,128)}', space=vmem, size = 0x400, scoped, tag = 'scratch operand']
  #allocation3 [shape = 'f32[2,32]{1,0:T(2,128)}', space=vmem, size = 0x400, scoped, tag = 'scratch operand']
  %s0 = inlined_call_operand.vmem [shape: f32[8,2,128], index: 0, kind: input, shape index: {}]
  %s1 = inlined_call_operand.vmem [shape: bf16[32,128], index: 1, kind: input, shape index: {}]
  %s2 = inlined_call_operand.vmem [shape: bf16[8,2,32], index: 2, kind: output, shape index: {0}]
  %s3 = inlined_call_operand.hbm [shape: f32[1,2,32], index: 3, kind: output, shape index: {1}]
  %s4 = inlined_call_operand.hbm [shape: f32[1,2,32], index: 4, kind: output, shape index: {2}]
  %5 = xla_tuple %s2, %s3, %s4
  %s6 = sld [smem:[#allocation0]]
  $region65: #{sharnn_forward.15} parent=0
    _
  %s8 = ssub.s32 1, %s6
  %s9 = scalar_select 0, %s8, %s6
  $region1: #{sharnn_forward.15} parent=0
    #allocation4 [shape = 'u8[1024]{0}', space=vmem, size = 0x400, scoped, tag = 'output window, operand 1, single buffered']
    #allocation5 [shape = 's32[2]{0}', space=sflag, size = 0x8, scoped, tag = 'scoped memory for sharnn_forward.15']
    #allocation6 [shape = 'u8[1024]{0}', space=vmem, size = 0x400, scoped, tag = 'output window, operand 2, single buffered']
    #allocation7 [shape = 's32[1]{0}', space=sflag, size = 0x4, scoped, tag = 'scoped memory for sharnn_forward.15']
    %10 = vsyncpa [#allocation5], 0
    %11 = vsyncpa [#allocation7], 0
    loop: start=0, step=1, limit=10
    $region2: #{sharnn_forward.15} parent=1 // loop_pre_header
      _
    $region3: #{sharnn_forward.15} parent=1 // loop_header
      %s13 = sphi 0, %s17
      %p14 = scmp.ge.s32.totalorder %s13, 10
      %s23 = sphi 0, %s25
      %s26 = sphi 0, %s23
      %s27 = sphi 0, %s26
      %s43 = sphi 0, %s27
      %s47 = sphi 0, %s47
      %s49 = sphi 0, %s47
      %s50 = sphi 0, %s49
      %s64 = sphi 0, %s50
      %s70 = sphi 0, %s72
      %s73 = sphi 0, %s70
      %s74 = sphi 0, %s73
      %s90 = sphi 0, %s74
      %s94 = sphi 0, %s94
      %s96 = sphi 0, %s94
      %s97 = sphi 0, %s96
      %s111 = sphi 0, %s97
      %s115 = sphi 0, %s115
      %s117 = sphi 0, %s115
      %s118 = sphi 0, %s117
      %s132 = sphi 0, %s118
    $region4: #{sharnn_forward.15} parent=1 // loop_header_branch
      %16 = sbr.rel (%p14) target = $region8
    $region5: #{sharnn_forward.15} parent=1 // loop_body
      %s18 = ssub.s32 %s13, 1
      %s19 = ssub.s32 %s13, 2
      %s20 = sadd.s32 %s13, 1
      %s21 = ssub.s32 %s13, %s20
      %p22 = scmp.eq.s32.totalorder %s21, 0
      %s24 = sadd.s32 %s23, 1
      %s25 = scalar_select %p22, %s23, %s24
      %p28 = pneg %p22
      %p29 = scmp.eq.s32.totalorder %s13, 7
      %p30 = por %p28, %p29
      %p31 = scmp.ne.s32.totalorder %s23, %s26
      %p32 = scmp.eq.s32.totalorder %s13, 0
      %p33 = por %p31, %p32
      %p34 = scmp.ne.s32.totalorder %s23, %s26
      %p35 = scmp.eq.s32.totalorder %s18, 7
      %p36 = por %p34, %p35
      %p37 = scmp.ne.s32.totalorder %s26, %s27
      %p38 = scmp.eq.s32.totalorder %s18, 0
      %p39 = por %p37, %p38
      %p40 = scmp.ne.s32.totalorder %s26, %s27
      %p41 = scmp.eq.s32.totalorder %s19, 7
      %p42 = por %p40, %p41
      %p44 = scmp.ne.s32.totalorder %s27, %s43
      %p45 = scmp.eq.s32.totalorder %s19, 0
      %p46 = por %p44, %p45
      %s48 = sadd.s32 %s47, 1
      %p51 = scmp.eq.s32.totalorder %s13, 7
      %p52 = scmp.ne.s32.totalorder %s47, %s49
      %p53 = scmp.eq.s32.totalorder %s13, 0
      %p54 = por %p52, %p53
      %p55 = scmp.ne.s32.totalorder %s47, %s49
      %p56 = scmp.eq.s32.totalorder %s18, 7
      %p57 = por %p55, %p56
      %p58 = scmp.ne.s32.totalorder %s49, %s50
      %p59 = scmp.eq.s32.totalorder %s18, 0
      %p60 = por %p58, %p59
      %p61 = scmp.ne.s32.totalorder %s49, %s50
      %p62 = scmp.eq.s32.totalorder %s19, 7
      %p63 = por %p61, %p62
      %p65 = scmp.ne.s32.totalorder %s50, %s64
      %p66 = scmp.eq.s32.totalorder %s19, 0
      %p67 = por %p65, %p66
      %s68 = ssub.s32 %s13, %s20
      %p69 = scmp.eq.s32.totalorder %s68, 0
      %s71 = sadd.s32 %s70, 1
      %s72 = scalar_select %p69, %s70, %s71
      %p75 = pneg %p69
      %p76 = scmp.eq.s32.totalorder %s13, 7
      %p77 = por %p75, %p76
      %p78 = scmp.ne.s32.totalorder %s70, %s73
      %p79 = scmp.eq.s32.totalorder %s13, 0
      %p80 = por %p78, %p79
      %p81 = scmp.ne.s32.totalorder %s70, %s73
      %p82 = scmp.eq.s32.totalorder %s18, 7
      %p83 = por %p81, %p82
      %p84 = scmp.ne.s32.totalorder %s73, %s74
      %p85 = scmp.eq.s32.totalorder %s18, 0
      %p86 = por %p84, %p85
      %p87 = scmp.ne.s32.totalorder %s73, %s74
      %p88 = scmp.eq.s32.totalorder %s19, 7
      %p89 = por %p87, %p88
      %p91 = scmp.ne.s32.totalorder %s74, %s90
      %p92 = scmp.eq.s32.totalorder %s19, 0
      %p93 = por %p91, %p92
      %s95 = sadd.s32 %s94, 1
      %p98 = scmp.eq.s32.totalorder %s13, 7
      %p99 = scmp.ne.s32.totalorder %s94, %s96
      %p100 = scmp.eq.s32.totalorder %s13, 0
      %p101 = por %p99, %p100
      %p102 = scmp.ne.s32.totalorder %s94, %s96
      %p103 = scmp.eq.s32.totalorder %s18, 7
      %p104 = por %p102, %p103
      %p105 = scmp.ne.s32.totalorder %s96, %s97
      %p106 = scmp.eq.s32.totalorder %s18, 0
      %p107 = por %p105, %p106
      %p108 = scmp.ne.s32.totalorder %s96, %s97
      %p109 = scmp.eq.s32.totalorder %s19, 7
      %p110 = por %p108, %p109
      %p112 = scmp.ne.s32.totalorder %s97, %s111
      %p113 = scmp.eq.s32.totalorder %s19, 0
      %p114 = por %p112, %p113
      %s116 = sadd.s32 %s115, 1
      %p119 = scmp.eq.s32.totalorder %s13, 7
      %p120 = scmp.ne.s32.totalorder %s115, %s117
      %p121 = scmp.eq.s32.totalorder %s13, 0
      %p122 = por %p120, %p121
      %p123 = scmp.ne.s32.totalorder %s115, %s117
      %p124 = scmp.eq.s32.totalorder %s18, 7
      %p125 = por %p123, %p124
      %p126 = scmp.ne.s32.totalorder %s117, %s118
      %p127 = scmp.eq.s32.totalorder %s18, 0
      %p128 = por %p126, %p127
      %p129 = scmp.ne.s32.totalorder %s117, %s118
      %p130 = scmp.eq.s32.totalorder %s19, 7
      %p131 = por %p129, %p130
      %p133 = scmp.ne.s32.totalorder %s118, %s132
      %p134 = scmp.eq.s32.totalorder %s19, 0
      %p135 = por %p133, %p134
      %p136 = scmp.le.s32.totalorder 1, %s13
      %p137 = scmp.lt.s32.totalorder %s13, 9
      %p138 = pnand %p136, %p137
      %p139 = pneg %p138
      // Predicated region
      $region9: #{sharnn_forward.15} parent=5 // pred_check
        _
      $region10: #{sharnn_forward.15} parent=5 // pred_check_branch
        %141 = sbr.rel (%p138) target = $region12
      $region11: #{sharnn_forward.15} parent=5 // pred_region
        %s142 = ssub.s32 %s13, 1
        // Predicated region
        $region13: #{sharnn_forward.15} parent=11 // pred_check
          %p143 = pneg %p60
        $region14: #{sharnn_forward.15} parent=11 // pred_check_branch
          %145 = sbr.rel (%p143) target = $region16
        $region15: #{sharnn_forward.15} parent=11 // pred_region
          _
        $region16: #{sharnn_forward.15} parent=11 // pred_fallthru
          _
      $region12: #{sharnn_forward.15} parent=5 // pred_fallthru
        _
      %p146 = scmp.lt.s32.totalorder %s13, 8
      // Predicated region
      $region17: #{sharnn_forward.15} parent=5 // pred_check
        %p147 = pneg %p146
      $region18: #{sharnn_forward.15} parent=5 // pred_check_branch
        %149 = sbr.rel (%p147) target = $region20
      $region19: #{sharnn_forward.15} parent=5 // pred_region
        // Predicated region
        $region21: #{sharnn_forward.15} parent=19 // pred_check
          %p150 = pneg %p33
        $region22: #{sharnn_forward.15} parent=19 // pred_check_branch
          %152 = sbr.rel (%p150) target = $region24
        $region23: #{sharnn_forward.15} parent=19 // pred_region
          %p153 = scmp.lt.s32.totalorder %s13, 7
          %s154 = scalar_select %p153, %s13, 7
          %s155 = smul.addr %s154, 2
          %s156 = scalar_lea.vmem %s0, %s155
        $region24: #{sharnn_forward.15} parent=19 // pred_fallthru
          _
      $region20: #{sharnn_forward.15} parent=5 // pred_fallthru
        _
      %p157 = scmp.le.s32.totalorder 1, %s13
      %p158 = scmp.lt.s32.totalorder %s13, 9
      %p159 = pnand %p157, %p158
      %p160 = pneg %p159
      // Predicated region
      $region25: #{sharnn_forward.15} parent=5 // pred_check
        _
      $region26: #{sharnn_forward.15} parent=5 // pred_check_branch
        %162 = sbr.rel (%p159) target = $region28
      $region27: #{sharnn_forward.15} parent=5 // pred_region
        %s163 = ssub.s32 %s13, 1
        %p164 = scmp.lt.s32.totalorder %s18, 7
        %s165 = scalar_select %p164, %s18, 7
        %s166 = smul.addr %s165, 2
        %s167 = scalar_lea.vmem %s0, %s166
        %p168 = pneg %p39
        %p169 = pneg %p36
        %p170 = pneg %p60
        %p171 = pneg %p57
        %p172 = pneg %p86
        %p173 = pneg %p83
        %p174 = scmp.lt.s32.totalorder %s18, 7
        %s175 = scalar_select %p174, %s18, 7
        %s176 = scalar_lea.vmem %s2, %s175
        %p177 = pneg %p107
        %p178 = pneg %p104
        %p179 = pneg %p128
        %p180 = pneg %p125
        %p181 = scmp.lt.s32.totalorder %s18, 7
        %s182 = scalar_select %p181, %s18, 7
        %s183 = smul.addr %s182, 2
        %s184 = scalar_lea.vmem %s0, %s183
        %p185 = scmp.lt.s32.totalorder %s18, 7
        %s186 = scalar_select %p185, %s18, 7
        %s187 = scalar_lea.vmem %s2, %s186
        %p189 = scmp.eq.s32.totalorder %s18, 0
        // Predicated region
        $region29: #{sharnn_forward.15} parent=27 // pred_check
          %p190 = pneg %p189
        $region30: #{sharnn_forward.15} parent=27 // pred_check_branch
          %192 = sbr.rel (%p190) target = $region32
        $region31: #{sharnn_forward.15} parent=27 // pred_region
          %vm193 = vcmask 254976
          %194 = vst.msk [vmem:[#allocation2] sm:$0x3] %vm193, 0.0
          %195 = vst.msk [vmem:[#allocation3] sm:$0x3] %vm193, 0.0
        $region32: #{sharnn_forward.15} parent=27 // pred_fallthru
          _
        %v196 = vld [vmem:[%s184] sm:$0x3]
        %v197 = vld [vmem:[#allocation2] sm:$0x3]
        %v198 = vpack.c.bf16 %v197, %v197
        %v199 = vld [vmem:[%s1] sm:$0xf]
        %v200 = vld [vmem:[%s1 + $0x4] sm:$0xf]
        %v201 = vld [vmem:[%s1 + $0x8] sm:$0xf]
        %v202 = vld [vmem:[%s1 + $0xc] sm:$0xf]
        %v207 = vunpack.c.l.b16 %v199
        %v208 = vunpack.c.l.b16 %v200
        %v209 = vunpack.c.l.b16 %v201
        %v210 = vunpack.c.l.b16 %v202
        %v211 = vpack.c.b16 %v208, %v207
        %v212 = vpack.c.b16 %v210, %v209
        %vm215 = vcmask 261120
        %v217 = vsel %vm215, %v198, 0
        %219 = vmatpush.bf16.msra.mxu0 0
        %220 = vmatpush.bf16.msra.mxu0 0
        %221 = vmatpush.bf16.msra.mxu0 0
        %222 = vmatpush.bf16.msra.mxu0 0
        %223 = vmatpush.bf16.msra.mxu0 0
        %224 = vmatpush.bf16.msra.mxu0 0
        %225 = vmatpush.bf16.msra.mxu0 %v212
        %226 = vmatpush.bf16.msra.mxu0 %v211
        %227 = vmatmul.bf16.gmra.mxu0 %v217
        %v228 = vpop.f32.mrf.mxu0
        %v229 = vadd.f32 0.0, %v228
        %v230 = vpop.f32.mrf.mxu0
        %231 = vdwg.mxu0
        %v232 = vadd.f32 %v196, %v229
        %v233 = vxor.u32 %v232, 2147483648
        %v234 = vmul.f32 %v233, 1.442695
        %v235 = vpow.pop %v234
        %v236 = vadd.f32 %v235, 1.0
        %v237 = vrcp.pop %v236
        %v238 = vmul.f32 %v236, %v237
        %v239 = vsub.f32 1.0, %v238
        %v240 = vmul.f32 %v237, %v239
        %v241 = vadd.f32 %v237, %v240
        %vm242 = vweird.f32 %v236
        %vm243 = vweird.f32 %v237
        %vm244 = vmor %vm242, %vm243
        %v245 = vsel %vm244, %v237, %v241
        %v246 = vand.u32 2147483647, %v236
        %vm247 = vcmp.eq.f32.partialorder %v246, 8.507059e+37
        %v248 = vand.u32 %v236, 2147483648
        %v249 = vor.u32 1.1754944e-38, %v248
        %v250 = vsel %vm247, %v249, %v245
        %v251 = vmul.f32 1.0, %v250
        %v252 = vtanh.pop %v232
        %v253 = vld [vmem:[#allocation3] sm:$0x3]
        %255 = vrot.lane.b32.xlu0 %v253, 32
        %v256 = vpop.permute.xlu0 %255
        %v258 = vmul.f32 %v251, %v256
        %260 = vrot.lane.b32.xlu0 %v252, 64
        %v261 = vpop.permute.xlu0 %260
        %v263 = vmul.f32 %v251, %v261
        %265 = vrot.lane.b32.xlu0 %v263, 32
        %v266 = vpop.permute.xlu0 %265
        %v268 = vadd.f32 %v258, %v266
        %v269 = vtanh.pop %v268
        %271 = vrot.lane.b32.xlu0 %v269, 64
        %v272 = vpop.permute.xlu0 %271
        %v274 = vmul.f32 %v251, %v272
        %276 = vrot.lane.b32.xlu0 %v274, 32
        %v277 = vpop.permute.xlu0 %276
        %vm279 = vcmask 254976
        %280 = vst.msk [vmem:[#allocation2] sm:$0x3] %vm279, %v277
        %282 = vrot.lane.b32.xlu0 %v268, 96
        %v283 = vpop.permute.xlu0 %282
        %285 = vst.msk [vmem:[#allocation3] sm:$0x3] %vm279, %v283
        %v286 = vpack.c.bf16 %v274, %v274
        %v288 = vrot.slane %v286, 3
        %vm289 = vcmask 1040384
        %v292 = vsel %vm289, %v286, %v288
        %294 = vrot.lane.b32.xlu0 %v292, 32
        %v295 = vpop.permute.xlu0 %294
        %vm297 = vcmask 253952
        %298 = vst.msk [vmem:[%s187] sm:$0x1] %vm297, %v295
        %p299 = scmp.eq.s32.totalorder %s18, 7
        // Predicated region
        $region33: #{sharnn_forward.15} parent=27 // pred_check
          %p300 = pneg %p299
        $region34: #{sharnn_forward.15} parent=27 // pred_check_branch
          %302 = sbr.rel (%p300) target = $region36
        $region35: #{sharnn_forward.15} parent=27 // pred_region
          %v303 = vld [vmem:[#allocation2] sm:$0x3]
          %304 = vst.msk [vmem:[#allocation4] sm:$0x3] %vm279, %v303
          %v305 = vld [vmem:[#allocation3] sm:$0x3]
          %306 = vst.msk [vmem:[#allocation6] sm:$0x3] %vm279, %v305
        $region36: #{sharnn_forward.15} parent=27 // pred_fallthru
          _
        %p307 = scmp.lt.s32.totalorder %s18, 7
        %s308 = scalar_select %p307, %s18, 7
        %s309 = scalar_lea.vmem %s2, %s308
        // Predicated region
        $region37: #{sharnn_forward.15} parent=27 // pred_check
          %p310 = pneg %p83
        $region38: #{sharnn_forward.15} parent=27 // pred_check_branch
          %312 = sbr.rel (%p310) target = $region40
        $region39: #{sharnn_forward.15} parent=27 // pred_region
          _
        $region40: #{sharnn_forward.15} parent=27 // pred_fallthru
          _
        // Predicated region
        $region41: #{sharnn_forward.15} parent=27 // pred_check
          %p313 = pneg %p104
        $region42: #{sharnn_forward.15} parent=27 // pred_check_branch
          %315 = sbr.rel (%p313) target = $region44
        $region43: #{sharnn_forward.15} parent=27 // pred_region
          %317 = vsyncadd [#allocation5], 0
          %s319 = sshll.u32 [#allocation4], 4
          %s320 = int_to_ptr.vmem [resolvable:$true] %s319
          %s321 = sshll.u32 %s3, 4
          %s322 = int_to_ptr.hbm [resolvable:$true] %s321
          %324 = dma.vmem_to_hbm [thread:$0]  %s320, 32, %s322, [#allocation5]
        $region44: #{sharnn_forward.15} parent=27 // pred_fallthru
          _
        // Predicated region
        $region45: #{sharnn_forward.15} parent=27 // pred_check
          %p325 = pneg %p125
        $region46: #{sharnn_forward.15} parent=27 // pred_check_branch
          %327 = sbr.rel (%p325) target = $region48
        $region47: #{sharnn_forward.15} parent=27 // pred_region
          %329 = vsyncadd [#allocation7], 0
          %s331 = sshll.u32 [#allocation6], 4
          %s332 = int_to_ptr.vmem [resolvable:$true] %s331
          %s333 = sshll.u32 %s4, 4
          %s334 = int_to_ptr.hbm [resolvable:$true] %s333
          %336 = dma.vmem_to_hbm [thread:$0]  %s332, 32, %s334, [#allocation7]
        $region48: #{sharnn_forward.15} parent=27 // pred_fallthru
          _
        // Predicated region
        $region49: #{sharnn_forward.15} parent=27 // pred_check
          %p337 = pneg %p104
        $region50: #{sharnn_forward.15} parent=27 // pred_check_branch
          %339 = sbr.rel (%p337) target = $region52
        $region51: #{sharnn_forward.15} parent=27 // pred_region
          %341 = dma.done [#allocation5], 32
        $region52: #{sharnn_forward.15} parent=27 // pred_fallthru
          _
        // Predicated region
        $region53: #{sharnn_forward.15} parent=27 // pred_check
          %p342 = pneg %p125
        $region54: #{sharnn_forward.15} parent=27 // pred_check_branch
          %344 = sbr.rel (%p342) target = $region56
        $region55: #{sharnn_forward.15} parent=27 // pred_region
          %346 = dma.done [#allocation7], 32
        $region56: #{sharnn_forward.15} parent=27 // pred_fallthru
          _
      $region28: #{sharnn_forward.15} parent=5 // pred_fallthru
        _
      %p347 = scmp.le.s32.totalorder 2, %s13
      // Predicated region
      $region57: #{sharnn_forward.15} parent=5 // pred_check
        %p348 = pneg %p347
      $region58: #{sharnn_forward.15} parent=5 // pred_check_branch
        %350 = sbr.rel (%p348) target = $region60
      $region59: #{sharnn_forward.15} parent=5 // pred_region
        %s351 = ssub.s32 %s13, 2
        // Predicated region
        $region61: #{sharnn_forward.15} parent=59 // pred_check
          %p352 = pneg %p89
        $region62: #{sharnn_forward.15} parent=59 // pred_check_branch
          %354 = sbr.rel (%p352) target = $region64
        $region63: #{sharnn_forward.15} parent=59 // pred_region
          %p355 = scmp.lt.s32.totalorder %s19, 7
          %s356 = scalar_select %p355, %s19, 7
          %s357 = scalar_lea.vmem %s2, %s356
        $region64: #{sharnn_forward.15} parent=59 // pred_fallthru
          _
      $region60: #{sharnn_forward.15} parent=5 // pred_fallthru
        _
    $region6: #{sharnn_forward.15} parent=1 // loop_footer
      %s17 = sadd.s32 1, %s13
    $region7: #{sharnn_forward.15} parent=1 // loop_footer_branch
      %12 = sbr.rel target = $region3
    $region8: #{sharnn_forward.15} parent=1 // loop_exit
      _
    %358 = vsyncpa [#allocation5], 1
    %s359 = scalar_lea.sflag [#allocation5], 1
    %360 = vsyncpa %s359, 1
    %361 = vsyncpa [#allocation7], 1

// kernel: sharnn_forward.21
$region0: #{sharnn_forward.21}
  #allocation0 [shape = 'u32[]', space=smem, size = 0x4, offset = 0x4, fixed_abs, tag = 'smem constant byte address 0x4 - core index']
  #allocation1 [shape = 'u32[72,128]{1,0:T(1,128)}', space=vmem, size = 0x9000, scoped, tag = 'internal scratch']
  %s0 = inlined_call_operand.vmem [shape: bf16[16,32], index: 0, kind: input, shape index: {}]
  %s1 = inlined_call_operand.vmem [shape: bf16[32,64], index: 1, kind: input, shape index: {}]
  %s2 = inlined_call_operand.vmem [shape: f32[1,64], index: 2, kind: input, shape index: {}]
  %s3 = inlined_call_operand.vmem [shape: bf16[16,64], index: 3, kind: output, shape index: {}]
  %s4 = sld [smem:[#allocation0]]
  $region22: #{sharnn_forward.21} parent=0
    _
  %s6 = ssub.s32 1, %s4
  %s7 = scalar_select 0, %s6, %s4
  // Predicated region
  $region2: #{sharnn_forward.21} parent=0 // pred_check
    _
  $region3: #{sharnn_forward.21} parent=0 // pred_check_branch
    %9 = sbr.rel (0) target = $region5
  $region4: #{sharnn_forward.21} parent=0 // pred_region
    _
  $region5: #{sharnn_forward.21} parent=0 // pred_fallthru
    _
  // Predicated region
  $region6: #{sharnn_forward.21} parent=0 // pred_check
    _
  $region7: #{sharnn_forward.21} parent=0 // pred_check_branch
    %11 = sbr.rel (0) target = $region9
  $region8: #{sharnn_forward.21} parent=0 // pred_region
    _
  $region9: #{sharnn_forward.21} parent=0 // pred_fallthru
    _
  // Predicated region
  $region10: #{sharnn_forward.21} parent=0 // pred_check
    _
  $region11: #{sharnn_forward.21} parent=0 // pred_check_branch
    %13 = sbr.rel (0) target = $region13
  $region12: #{sharnn_forward.21} parent=0 // pred_region
    _
  $region13: #{sharnn_forward.21} parent=0 // pred_fallthru
    _
  %v15 = vld [vmem:[%s0] sm:$0xf]
  %v16 = vld [vmem:[%s0 + $0x4] sm:$0xf]
  %v17 = vld [vmem:[%s1] sm:$0xf]
  %v18 = vld [vmem:[%s1 + $0x4] sm:$0xf]
  %v19 = vld [vmem:[%s1 + $0x8] sm:$0xf]
  %v20 = vld [vmem:[%s1 + $0xc] sm:$0xf]
  %v21 = vld [vmem:[%s2] sm:$0x1]
  %v23 = vperm.slane %v21, 0
  %v27 = vunpack.c.l.b16 %v15
  %v28 = vunpack.c.l.b16 %v16
  %v29 = vpack.c.b16 %v28, %v27
  %v34 = vunpack.c.l.b16 %v17
  %v35 = vunpack.c.l.b16 %v18
  %v36 = vunpack.c.l.b16 %v19
  %v37 = vunpack.c.l.b16 %v20
  %v38 = vpack.c.b16 %v35, %v34
  %v39 = vpack.c.b16 %v37, %v36
  %vm42 = vcmask 261120
  %v44 = vsel %vm42, %v29, 0
  %46 = vmatpush.bf16.msra.mxu0 0
  %47 = vmatpush.bf16.msra.mxu0 0
  %48 = vmatpush.bf16.msra.mxu0 0
  %49 = vmatpush.bf16.msra.mxu0 0
  %50 = vmatpush.bf16.msra.mxu0 0
  %51 = vmatpush.bf16.msra.mxu0 0
  %52 = vmatpush.bf16.msra.mxu0 %v39
  %53 = vmatpush.bf16.msra.mxu0 %v38
  %54 = vmatmul.bf16.gmra.mxu0 %v44
  %v55 = vpop.f32.mrf.mxu0
  %v56 = vadd.f32 %v23, %v55
  %v57 = vpop.f32.mrf.mxu0
  %v58 = vadd.f32 %v23, %v57
  %59 = vdwg.mxu0
  %v60 = vpack.c.bf16 %v56, %v56
  %v61 = vpack.c.bf16 %v58, %v58
  %vm62 = vcmask 519168
  %63 = vst.msk [vmem:[%s3] sm:$0xf] %vm62, %v60
  %64 = vst.msk [vmem:[%s3 + $0x4] sm:$0xf] %vm62, %v61
  // Predicated region
  $region14: #{sharnn_forward.21} parent=0 // pred_check
    _
  $region15: #{sharnn_forward.21} parent=0 // pred_check_branch
    %66 = sbr.rel (0) target = $region17
  $region16: #{sharnn_forward.21} parent=0 // pred_region
    _
  $region17: #{sharnn_forward.21} parent=0 // pred_fallthru
    _
  // Predicated region
  $region18: #{sharnn_forward.21} parent=0 // pred_check
    _
  $region19: #{sharnn_forward.21} parent=0 // pred_check_branch
    %68 = sbr.rel (0) target = $region21
  $region20: #{sharnn_forward.21} parent=0 // pred_region
    _
  $region21: #{sharnn_forward.21} parent=0 // pred_fallthru
    _

// kernel: sharnn_forward.20
$region0: #{sharnn_forward.20}
  #allocation0 [shape = 'u32[]', space=smem, size = 0x4, offset = 0x4, fixed_abs, tag = 'smem constant byte address 0x4 - core index']
  #allocation1 [shape = 'u32[72,128]{1,0:T(1,128)}', space=vmem, size = 0x9000, scoped, tag = 'internal scratch']
  %s0 = inlined_call_operand.vmem [shape: bf16[16,32], index: 0, kind: input, shape index: {}]
  %s1 = inlined_call_operand.vmem [shape: bf16[32,32], index: 1, kind: input, shape index: {}]
  %s2 = inlined_call_operand.vmem [shape: f32[1,32], index: 2, kind: input, shape index: {}]
  %s3 = inlined_call_operand.vmem [shape: bf16[16,32], index: 3, kind: output, shape index: {}]
  %s4 = sld [smem:[#allocation0]]
  $region22: #{sharnn_forward.20} parent=0
    _
  %s6 = ssub.s32 1, %s4
  %s7 = scalar_select 0, %s6, %s4
  // Predicated region
  $region2: #{sharnn_forward.20} parent=0 // pred_check
    _
  $region3: #{sharnn_forward.20} parent=0 // pred_check_branch
    %9 = sbr.rel (0) target = $region5
  $region4: #{sharnn_forward.20} parent=0 // pred_region
    _
  $region5: #{sharnn_forward.20} parent=0 // pred_fallthru
    _
  // Predicated region
  $region6: #{sharnn_forward.20} parent=0 // pred_check
    _
  $region7: #{sharnn_forward.20} parent=0 // pred_check_branch
    %11 = sbr.rel (0) target = $region9
  $region8: #{sharnn_forward.20} parent=0 // pred_region
    _
  $region9: #{sharnn_forward.20} parent=0 // pred_fallthru
    _
  // Predicated region
  $region10: #{sharnn_forward.20} parent=0 // pred_check
    _
  $region11: #{sharnn_forward.20} parent=0 // pred_check_branch
    %13 = sbr.rel (0) target = $region13
  $region12: #{sharnn_forward.20} parent=0 // pred_region
    _
  $region13: #{sharnn_forward.20} parent=0 // pred_fallthru
    _
  %v15 = vld [vmem:[%s0] sm:$0xf]
  %v16 = vld [vmem:[%s0 + $0x4] sm:$0xf]
  %v17 = vld [vmem:[%s1] sm:$0xf]
  %v18 = vld [vmem:[%s1 + $0x4] sm:$0xf]
  %v19 = vld [vmem:[%s1 + $0x8] sm:$0xf]
  %v20 = vld [vmem:[%s1 + $0xc] sm:$0xf]
  %v21 = vld [vmem:[%s2] sm:$0x1]
  %v23 = vperm.slane %v21, 0
  %v27 = vunpack.c.l.b16 %v15
  %v28 = vunpack.c.l.b16 %v16
  %v29 = vpack.c.b16 %v28, %v27
  %v34 = vunpack.c.l.b16 %v17
  %v35 = vunpack.c.l.b16 %v18
  %v36 = vunpack.c.l.b16 %v19
  %v37 = vunpack.c.l.b16 %v20
  %v38 = vpack.c.b16 %v35, %v34
  %v39 = vpack.c.b16 %v37, %v36
  %vm42 = vcmask 261120
  %v44 = vsel %vm42, %v29, 0
  %46 = vmatpush.bf16.msra.mxu0 0
  %47 = vmatpush.bf16.msra.mxu0 0
  %48 = vmatpush.bf16.msra.mxu0 0
  %49 = vmatpush.bf16.msra.mxu0 0
  %50 = vmatpush.bf16.msra.mxu0 0
  %51 = vmatpush.bf16.msra.mxu0 0
  %52 = vmatpush.bf16.msra.mxu0 %v39
  %53 = vmatpush.bf16.msra.mxu0 %v38
  %54 = vmatmul.bf16.gmra.mxu0 %v44
  %v55 = vpop.f32.mrf.mxu0
  %v56 = vadd.f32 %v23, %v55
  %v57 = vpop.f32.mrf.mxu0
  %v58 = vadd.f32 %v23, %v57
  %59 = vdwg.mxu0
  %v60 = vpack.c.bf16 %v56, %v56
  %v61 = vpack.c.bf16 %v58, %v58
  %vm62 = vcmask 257024
  %63 = vst.msk [vmem:[%s3] sm:$0xf] %vm62, %v60
  %64 = vst.msk [vmem:[%s3 + $0x4] sm:$0xf] %vm62, %v61
  // Predicated region
  $region14: #{sharnn_forward.20} parent=0 // pred_check
    _
  $region15: #{sharnn_forward.20} parent=0 // pred_check_branch
    %66 = sbr.rel (0) target = $region17
  $region16: #{sharnn_forward.20} parent=0 // pred_region
    _
  $region17: #{sharnn_forward.20} parent=0 // pred_fallthru
    _
  // Predicated region
  $region18: #{sharnn_forward.20} parent=0 // pred_check
    _
  $region19: #{sharnn_forward.20} parent=0 // pred_check_branch
    %68 = sbr.rel (0) target = $region21
  $region20: #{sharnn_forward.20} parent=0 // pred_region
    _
  $region21: #{sharnn_forward.20} parent=0 // pred_fallthru
    _

// kernel: sharnn_forward.22
$region0: #{sharnn_forward.22}
  #allocation0 [shape = 'u32[]', space=smem, size = 0x4, offset = 0x4, fixed_abs, tag = 'smem constant byte address 0x4 - core index']
  #allocation1 [shape = 'u32[72,128]{1,0:T(1,128)}', space=vmem, size = 0x9000, scoped, tag = 'internal scratch']
  #allocation2 [shape = 'f32[4,8,1]{2,1,0:T(8,128)}', space=vmem, size = 0x4000, scoped, tag = 'scratch operand']
  #allocation3 [shape = 'f32[4,8,1]{2,1,0:T(8,128)}', space=vmem, size = 0x4000, scoped, tag = 'scratch operand']
  #allocation4 [shape = 'f32[4,8,16]{2,1,0:T(8,128)}', space=vmem, size = 0x4000, scoped, tag = 'scratch operand']
  %s0 = inlined_call_operand.vmem [shape: bf16[4,8,16], index: 0, kind: input, shape index: {}]
  %s1 = inlined_call_operand.vmem [shape: bf16[4,8,16], index: 1, kind: input, shape index: {}]
  %s2 = inlined_call_operand.vmem [shape: bf16[4,8,16], index: 2, kind: input, shape index: {}]
  %s3 = inlined_call_operand.vmem [shape: bf16[4,8,16], index: 3, kind: output, shape index: {}]
  %s4 = sld [smem:[#allocation0]]
  $region34: #{sharnn_forward.22} parent=0
    _
  %s6 = ssub.s32 1, %s4
  %s7 = scalar_select 0, %s6, %s4
  // Predicated region
  $region2: #{sharnn_forward.22} parent=0 // pred_check
    _
  $region3: #{sharnn_forward.22} parent=0 // pred_check_branch
    %9 = sbr.rel (0) target = $region5
  $region4: #{sharnn_forward.22} parent=0 // pred_region
    _
  $region5: #{sharnn_forward.22} parent=0 // pred_fallthru
    _
  // Predicated region
  $region6: #{sharnn_forward.22} parent=0 // pred_check
    _
  $region7: #{sharnn_forward.22} parent=0 // pred_check_branch
    %11 = sbr.rel (0) target = $region9
  $region8: #{sharnn_forward.22} parent=0 // pred_region
    _
  $region9: #{sharnn_forward.22} parent=0 // pred_fallthru
    _
  // Predicated region
  $region10: #{sharnn_forward.22} parent=0 // pred_check
    _
  $region11: #{sharnn_forward.22} parent=0 // pred_check_branch
    %13 = sbr.rel (0) target = $region13
  $region12: #{sharnn_forward.22} parent=0 // pred_region
    _
  $region13: #{sharnn_forward.22} parent=0 // pred_fallthru
    _
  %p15 = scmp.eq.s32.totalorder 0, 0
  // Predicated region
  $region14: #{sharnn_forward.22} parent=0 // pred_check
    %p16 = pneg %p15
  $region15: #{sharnn_forward.22} parent=0 // pred_check_branch
    %18 = sbr.rel (%p16) target = $region17
  $region16: #{sharnn_forward.22} parent=0 // pred_region
    %vm19 = vcmask 7168
    %20 = vst.msk [vmem:[#allocation2] sm:$0xff] %vm19, -inf
    %21 = vst.msk [vmem:[#allocation2 + $0x8] sm:$0xff] %vm19, -inf
    %22 = vst.msk [vmem:[#allocation2 + $0x10] sm:$0xff] %vm19, -inf
    %23 = vst.msk [vmem:[#allocation2 + $0x18] sm:$0xff] %vm19, -inf
    %24 = vst.msk [vmem:[#allocation3] sm:$0xff] %vm19, 0.0
    %25 = vst.msk [vmem:[#allocation3 + $0x8] sm:$0xff] %vm19, 0.0
    %26 = vst.msk [vmem:[#allocation3 + $0x10] sm:$0xff] %vm19, 0.0
    %27 = vst.msk [vmem:[#allocation3 + $0x18] sm:$0xff] %vm19, 0.0
    %vm28 = vcmask 130048
    %29 = vst.msk [vmem:[#allocation4] sm:$0xff] %vm28, 0.0
    %30 = vst.msk [vmem:[#allocation4 + $0x8] sm:$0xff] %vm28, 0.0
    %31 = vst.msk [vmem:[#allocation4 + $0x10] sm:$0xff] %vm28, 0.0
    %32 = vst.msk [vmem:[#allocation4 + $0x18] sm:$0xff] %vm28, 0.0
  $region17: #{sharnn_forward.22} parent=0 // pred_fallthru
    _
  %s33 = smul.u32 0, 8
  %s34 = sadd.s32 %s33, 7
  %s35 = smul.u32 0, 8
  %p36 = scmp.ge.s32.totalorder %s34, %s35
  // Predicated region
  $region18: #{sharnn_forward.22} parent=0 // pred_check
    %p37 = pneg %p36
  $region19: #{sharnn_forward.22} parent=0 // pred_check_branch
    %39 = sbr.rel (%p37) target = $region21
  $region20: #{sharnn_forward.22} parent=0 // pred_region
    %v40 = vld [vmem:[%s0] sm:$0xf]
    %v41 = vld [vmem:[%s0 + $0x4] sm:$0xf]
    %v42 = vld [vmem:[%s0 + $0x8] sm:$0xf]
    %v43 = vld [vmem:[%s0 + $0xc] sm:$0xf]
    %v44 = vld [vmem:[%s1] sm:$0xf]
    %v45 = vld [vmem:[%s1 + $0x4] sm:$0xf]
    %v46 = vld [vmem:[%s1 + $0x8] sm:$0xf]
    %v47 = vld [vmem:[%s1 + $0xc] sm:$0xf]
    %v48 = vld [vmem:[%s2] sm:$0xf]
    %v49 = vld [vmem:[%s2 + $0x4] sm:$0xf]
    %v50 = vld [vmem:[%s2 + $0x8] sm:$0xf]
    %v51 = vld [vmem:[%s2 + $0xc] sm:$0xf]
    %vm52 = vcmask 130048
    %v54 = vsel %vm52, %v40, 0
    %v57 = vsel %vm52, %v44, 0
    %59 = vmatpush.bf16.xpose.msra.mxu0 0
    %60 = vmatpush.bf16.xpose.msra.mxu0 0
    %61 = vmatpush.bf16.xpose.msra.mxu0 0
    %62 = vmatpush.bf16.xpose.msra.mxu0 0
    %63 = vmatpush.bf16.xpose.msra.mxu0 0
    %64 = vmatpush.bf16.xpose.msra.mxu0 0
    %65 = vmatpush.bf16.xpose.msra.mxu0 0
    %66 = vmatpush.bf16.xpose.msra.mxu0 %v57
    %67 = vmatmul.bf16.gmra.mxu0 %v54
    %v68 = vpop.f32.mrf.mxu0
    %v69 = vadd.f32 0.0, %v68
    %v70 = vpop.f32.mrf.mxu0
    %71 = vdwg.mxu0
    %v73 = vsel %vm52, %v41, 0
    %v76 = vsel %vm52, %v45, 0
    %78 = vmatpush.bf16.xpose.msra.mxu0 0
    %79 = vmatpush.bf16.xpose.msra.mxu0 0
    %80 = vmatpush.bf16.xpose.msra.mxu0 0
    %81 = vmatpush.bf16.xpose.msra.mxu0 0
    %82 = vmatpush.bf16.xpose.msra.mxu0 0
    %83 = vmatpush.bf16.xpose.msra.mxu0 0
    %84 = vmatpush.bf16.xpose.msra.mxu0 0
    %85 = vmatpush.bf16.xpose.msra.mxu0 %v76
    %86 = vmatmul.bf16.gmra.mxu0 %v73
    %v87 = vpop.f32.mrf.mxu0
    %v88 = vadd.f32 0.0, %v87
    %v89 = vpop.f32.mrf.mxu0
    %90 = vdwg.mxu0
    %v92 = vsel %vm52, %v42, 0
    %v95 = vsel %vm52, %v46, 0
    %97 = vmatpush.bf16.xpose.msra.mxu0 0
    %98 = vmatpush.bf16.xpose.msra.mxu0 0
    %99 = vmatpush.bf16.xpose.msra.mxu0 0
    %100 = vmatpush.bf16.xpose.msra.mxu0 0
    %101 = vmatpush.bf16.xpose.msra.mxu0 0
    %102 = vmatpush.bf16.xpose.msra.mxu0 0
    %103 = vmatpush.bf16.xpose.msra.mxu0 0
    %104 = vmatpush.bf16.xpose.msra.mxu0 %v95
    %105 = vmatmul.bf16.gmra.mxu0 %v92
    %v106 = vpop.f32.mrf.mxu0
    %v107 = vadd.f32 0.0, %v106
    %v108 = vpop.f32.mrf.mxu0
    %109 = vdwg.mxu0
    %v111 = vsel %vm52, %v43, 0
    %v114 = vsel %vm52, %v47, 0
    %116 = vmatpush.bf16.xpose.msra.mxu0 0
    %117 = vmatpush.bf16.xpose.msra.mxu0 0
    %118 = vmatpush.bf16.xpose.msra.mxu0 0
    %119 = vmatpush.bf16.xpose.msra.mxu0 0
    %120 = vmatpush.bf16.xpose.msra.mxu0 0
    %121 = vmatpush.bf16.xpose.msra.mxu0 0
    %122 = vmatpush.bf16.xpose.msra.mxu0 0
    %123 = vmatpush.bf16.xpose.msra.mxu0 %v114
    %124 = vmatmul.bf16.gmra.mxu0 %v111
    %v125 = vpop.f32.mrf.mxu0
    %v126 = vadd.f32 0.0, %v125
    %v127 = vpop.f32.mrf.mxu0
    %128 = vdwg.mxu0
    %v129 = vmul.f32 %v69, 0.25
    %v130 = vmul.f32 %v88, 0.25
    %v131 = vmul.f32 %v107, 0.25
    %v132 = vmul.f32 %v126, 0.25
    %v133 = vlaneseq
    %v134 = vshrl.u32 %v133, 7
    %v135 = vstv %s33
    %v136 = vadd.s32 %v135, %v134
    %v137 = vlaneseq
    %v138 = vand.u32 %v137, 127
    %v139 = vstv %s35
    %v140 = vadd.s32 %v139, %v138
    %vm141 = vcmp.gt.s32.totalorder %v140, %v136
    %v142 = vsel %vm141, -1e+30, 0.0
    %v143 = vadd.f32 %v129, %v142
    %v144 = vadd.f32 %v130, %v142
    %v145 = vadd.f32 %v131, %v142
    %v146 = vadd.f32 %v132, %v142
    %v147 = vld [vmem:[#allocation2] sm:$0xff]
    %v148 = vld [vmem:[#allocation2 + $0x8] sm:$0xff]
    %v149 = vld [vmem:[#allocation2 + $0x10] sm:$0xff]
    %v150 = vld [vmem:[#allocation2 + $0x18] sm:$0xff]
    %vm151 = vcmask 64512
    %v152 = vsel %vm151, %v143, -inf
    %153 = vmax.xlane.f32.xlu0 %v152
    %v154 = vpop.xlane.xlu0 %153
    %v155 = vsel %vm151, %v144, -inf
    %156 = vmax.xlane.f32.xlu0 %v155
    %v157 = vpop.xlane.xlu0 %156
    %v158 = vsel %vm151, %v145, -inf
    %159 = vmax.xlane.f32.xlu0 %v158
    %v160 = vpop.xlane.xlu0 %159
    %v161 = vsel %vm151, %v146, -inf
    %162 = vmax.xlane.f32.xlu0 %v161
    %v163 = vpop.xlane.xlu0 %162
    %v164 = vmax.f32 %v147, %v154
    %v165 = vmax.f32 %v148, %v157
    %v166 = vmax.f32 %v149, %v160
    %v167 = vmax.f32 %v150, %v163
    %v168 = vsub.f32 %v147, %v164
    %v169 = vsub.f32 %v148, %v165
    %v170 = vsub.f32 %v149, %v166
    %v171 = vsub.f32 %v150, %v167
    %v172 = vmul.f32 %v168, 1.442695
    %v173 = vpow.pop %v172
    %v174 = vmul.f32 %v169, 1.442695
    %v175 = vpow.pop %v174
    %v176 = vmul.f32 %v170, 1.442695
    %v177 = vpow.pop %v176
    %v178 = vmul.f32 %v171, 1.442695
    %v179 = vpow.pop %v178
    %181 = vset.pattern.permute.xlu0 0
    %182 = vperm.xlu0 %181, %v164
    %v183 = vpop.permute.xlu0 %182
    %186 = vset.pattern.permute.xlu0 0
    %187 = vperm.xlu0 %186, %v165
    %v188 = vpop.permute.xlu0 %187
    %191 = vset.pattern.permute.xlu0 0
    %192 = vperm.xlu0 %191, %v166
    %v193 = vpop.permute.xlu0 %192
    %196 = vset.pattern.permute.xlu0 0
    %197 = vperm.xlu0 %196, %v167
    %v198 = vpop.permute.xlu0 %197
    %v200 = vsub.f32 %v143, %v183
    %v201 = vsub.f32 %v144, %v188
    %v202 = vsub.f32 %v145, %v193
    %v203 = vsub.f32 %v146, %v198
    %v204 = vmul.f32 %v200, 1.442695
    %v205 = vpow.pop %v204
    %v206 = vmul.f32 %v201, 1.442695
    %v207 = vpow.pop %v206
    %v208 = vmul.f32 %v202, 1.442695
    %v209 = vpow.pop %v208
    %v210 = vmul.f32 %v203, 1.442695
    %v211 = vpow.pop %v210
    %v212 = vld [vmem:[#allocation3] sm:$0xff]
    %v213 = vld [vmem:[#allocation3 + $0x8] sm:$0xff]
    %v214 = vld [vmem:[#allocation3 + $0x10] sm:$0xff]
    %v215 = vld [vmem:[#allocation3 + $0x18] sm:$0xff]
    %v216 = vmul.f32 %v173, %v212
    %v217 = vmul.f32 %v175, %v213
    %v218 = vmul.f32 %v177, %v214
    %v219 = vmul.f32 %v179, %v215
    %v220 = vsel %vm151, %v205, 0.0
    %221 = vadd.xlane.f32.xlu0 %v220
    %v222 = vpop.xlane.xlu0 %221
    %v223 = vsel %vm151, %v207, 0.0
    %224 = vadd.xlane.f32.xlu0 %v223
    %v225 = vpop.xlane.xlu0 %224
    %v226 = vsel %vm151, %v209, 0.0
    %227 = vadd.xlane.f32.xlu0 %v226
    %v228 = vpop.xlane.xlu0 %227
    %v229 = vsel %vm151, %v211, 0.0
    %230 = vadd.xlane.f32.xlu0 %v229
    %v231 = vpop.xlane.xlu0 %230
    %v232 = vadd.f32 %v216, %v222
    %v233 = vadd.f32 %v217, %v225
    %v234 = vadd.f32 %v218, %v228
    %v235 = vadd.f32 %v219, %v231
    %vm236 = vcmask 7168
    %237 = vst.msk [vmem:[#allocation3] sm:$0xff] %vm236, %v232
    %238 = vst.msk [vmem:[#allocation3 + $0x8] sm:$0xff] %vm236, %v233
    %239 = vst.msk [vmem:[#allocation3 + $0x10] sm:$0xff] %vm236, %v234
    %240 = vst.msk [vmem:[#allocation3 + $0x18] sm:$0xff] %vm236, %v235
    %v241 = vld [vmem:[#allocation4] sm:$0xff]
    %v242 = vld [vmem:[#allocation4 + $0x8] sm:$0xff]
    %v243 = vld [vmem:[#allocation4 + $0x10] sm:$0xff]
    %v244 = vld [vmem:[#allocation4 + $0x18] sm:$0xff]
    %246 = vset.pattern.permute.xlu0 0
    %247 = vperm.xlu0 %246, %v173
    %v248 = vpop.permute.xlu0 %247
    %251 = vset.pattern.permute.xlu0 0
    %252 = vperm.xlu0 %251, %v175
    %v253 = vpop.permute.xlu0 %252
    %256 = vset.pattern.permute.xlu0 0
    %257 = vperm.xlu0 %256, %v177
    %v258 = vpop.permute.xlu0 %257
    %261 = vset.pattern.permute.xlu0 0
    %262 = vperm.xlu0 %261, %v179
    %v263 = vpop.permute.xlu0 %262
    %v265 = vmul.f32 %v248, %v241
    %v266 = vmul.f32 %v253, %v242
    %v267 = vmul.f32 %v258, %v243
    %v268 = vmul.f32 %v263, %v244
    %v269 = vpack.c.bf16 %v205, %v205
    %v270 = vpack.c.bf16 %v207, %v207
    %v271 = vpack.c.bf16 %v209, %v209
    %v272 = vpack.c.bf16 %v211, %v211
    %v274 = vsel %vm151, %v269, 0
    %vm276 = vcmask 1043456
    %v278 = vsel %vm276, %v48, 0
    %280 = vmatpush.bf16.msra.mxu0 0
    %281 = vmatpush.bf16.msra.mxu0 0
    %282 = vmatpush.bf16.msra.mxu0 0
    %283 = vmatpush.bf16.msra.mxu0 0
    %284 = vmatpush.bf16.msra.mxu0 0
    %285 = vmatpush.bf16.msra.mxu0 0
    %286 = vmatpush.bf16.msra.mxu0 0
    %287 = vmatpush.bf16.msra.mxu0 %v278
    %288 = vmatmul.bf16.gmra.mxu0 %v274
    %v289 = vpop.f32.mrf.mxu0
    %v290 = vadd.f32 0.0, %v289
    %v291 = vpop.f32.mrf.mxu0
    %292 = vdwg.mxu0
    %v294 = vsel %vm151, %v270, 0
    %v297 = vsel %vm276, %v49, 0
    %299 = vmatpush.bf16.msra.mxu0 0
    %300 = vmatpush.bf16.msra.mxu0 0
    %301 = vmatpush.bf16.msra.mxu0 0
    %302 = vmatpush.bf16.msra.mxu0 0
    %303 = vmatpush.bf16.msra.mxu0 0
    %304 = vmatpush.bf16.msra.mxu0 0
    %305 = vmatpush.bf16.msra.mxu0 0
    %306 = vmatpush.bf16.msra.mxu0 %v297
    %307 = vmatmul.bf16.gmra.mxu0 %v294
    %v308 = vpop.f32.mrf.mxu0
    %v309 = vadd.f32 0.0, %v308
    %v310 = vpop.f32.mrf.mxu0
    %311 = vdwg.mxu0
    %v313 = vsel %vm151, %v271, 0
    %v316 = vsel %vm276, %v50, 0
    %318 = vmatpush.bf16.msra.mxu0 0
    %319 = vmatpush.bf16.msra.mxu0 0
    %320 = vmatpush.bf16.msra.mxu0 0
    %321 = vmatpush.bf16.msra.mxu0 0
    %322 = vmatpush.bf16.msra.mxu0 0
    %323 = vmatpush.bf16.msra.mxu0 0
    %324 = vmatpush.bf16.msra.mxu0 0
    %325 = vmatpush.bf16.msra.mxu0 %v316
    %326 = vmatmul.bf16.gmra.mxu0 %v313
    %v327 = vpop.f32.mrf.mxu0
    %v328 = vadd.f32 0.0, %v327
    %v329 = vpop.f32.mrf.mxu0
    %330 = vdwg.mxu0
    %v332 = vsel %vm151, %v272, 0
    %v335 = vsel %vm276, %v51, 0
    %337 = vmatpush.bf16.msra.mxu0 0
    %338 = vmatpush.bf16.msra.mxu0 0
    %339 = vmatpush.bf16.msra.mxu0 0
    %340 = vmatpush.bf16.msra.mxu0 0
    %341 = vmatpush.bf16.msra.mxu0 0
    %342 = vmatpush.bf16.msra.mxu0 0
    %343 = vmatpush.bf16.msra.mxu0 0
    %344 = vmatpush.bf16.msra.mxu0 %v335
    %345 = vmatmul.bf16.gmra.mxu0 %v332
    %v346 = vpop.f32.mrf.mxu0
    %v347 = vadd.f32 0.0, %v346
    %v348 = vpop.f32.mrf.mxu0
    %349 = vdwg.mxu0
    %v350 = vadd.f32 %v265, %v290
    %v351 = vadd.f32 %v266, %v309
    %v352 = vadd.f32 %v267, %v328
    %v353 = vadd.f32 %v268, %v347
    %354 = vst.msk [vmem:[#allocation4] sm:$0xff] %vm52, %v350
    %355 = vst.msk [vmem:[#allocation4 + $0x8] sm:$0xff] %vm52, %v351
    %356 = vst.msk [vmem:[#allocation4 + $0x10] sm:$0xff] %vm52, %v352
    %357 = vst.msk [vmem:[#allocation4 + $0x18] sm:$0xff] %vm52, %v353
    %358 = vst.msk [vmem:[#allocation2] sm:$0xff] %vm236, %v164
    %359 = vst.msk [vmem:[#allocation2 + $0x8] sm:$0xff] %vm236, %v165
    %360 = vst.msk [vmem:[#allocation2 + $0x10] sm:$0xff] %vm236, %v166
    %361 = vst.msk [vmem:[#allocation2 + $0x18] sm:$0xff] %vm236, %v167
  $region21: #{sharnn_forward.22} parent=0 // pred_fallthru
    _
  // Predicated region
  $region22: #{sharnn_forward.22} parent=0 // pred_check
    %p362 = pneg %p15
  $region23: #{sharnn_forward.22} parent=0 // pred_check_branch
    %364 = sbr.rel (%p362) target = $region25
  $region24: #{sharnn_forward.22} parent=0 // pred_region
    %v365 = vld [vmem:[#allocation4] sm:$0xff]
    %v366 = vld [vmem:[#allocation4 + $0x8] sm:$0xff]
    %v367 = vld [vmem:[#allocation4 + $0x10] sm:$0xff]
    %v368 = vld [vmem:[#allocation4 + $0x18] sm:$0xff]
    %v369 = vld [vmem:[#allocation3] sm:$0xff]
    %v370 = vld [vmem:[#allocation3 + $0x8] sm:$0xff]
    %v371 = vld [vmem:[#allocation3 + $0x10] sm:$0xff]
    %v372 = vld [vmem:[#allocation3 + $0x18] sm:$0xff]
    %v373 = vrcp.pop %v369
    %v374 = vrcp.pop %v370
    %v375 = vrcp.pop %v371
    %v376 = vrcp.pop %v372
    %378 = vset.pattern.permute.xlu0 0
    %379 = vperm.xlu0 %378, %v373
    %v380 = vpop.permute.xlu0 %379
    %383 = vset.pattern.permute.xlu0 0
    %384 = vperm.xlu0 %383, %v374
    %v385 = vpop.permute.xlu0 %384
    %388 = vset.pattern.permute.xlu0 0
    %389 = vperm.xlu0 %388, %v375
    %v390 = vpop.permute.xlu0 %389
    %393 = vset.pattern.permute.xlu0 0
    %394 = vperm.xlu0 %393, %v376
    %v395 = vpop.permute.xlu0 %394
    %v397 = vmul.f32 %v365, %v380
    %v398 = vmul.f32 %v366, %v385
    %v399 = vmul.f32 %v367, %v390
    %v400 = vmul.f32 %v368, %v395
    %v401 = vpack.c.bf16 %v397, %v397
    %v402 = vpack.c.bf16 %v398, %v398
    %v403 = vpack.c.bf16 %v399, %v399
    %v404 = vpack.c.bf16 %v400, %v400
    %vm405 = vcmask 125952
    %406 = vst.msk [vmem:[%s3] sm:$0xf] %vm405, %v401
    %407 = vst.msk [vmem:[%s3 + $0x4] sm:$0xf] %vm405, %v402
    %408 = vst.msk [vmem:[%s3 + $0x8] sm:$0xf] %vm405, %v403
    %409 = vst.msk [vmem:[%s3 + $0xc] sm:$0xf] %vm405, %v404
  $region25: #{sharnn_forward.22} parent=0 // pred_fallthru
    _
  // Predicated region
  $region26: #{sharnn_forward.22} parent=0 // pred_check
    _
  $region27: #{sharnn_forward.22} parent=0 // pred_check_branch
    %411 = sbr.rel (0) target = $region29
  $region28: #{sharnn_forward.22} parent=0 // pred_region
    _
  $region29: #{sharnn_forward.22} parent=0 // pred_fallthru
    _
  // Predicated region
  $region30: #{sharnn_forward.22} parent=0 // pred_check
    _
  $region31: #{sharnn_forward.22} parent=0 // pred_check_branch
    %413 = sbr.rel (0) target = $region33
  $region32: #{sharnn_forward.22} parent=0 // pred_region
    _
  $region33: #{sharnn_forward.22} parent=0 // pred_fallthru
    _

// kernel: sharnn_forward.23
$region0: #{sharnn_forward.23}
  #allocation0 [shape = 'u32[]', space=smem, size = 0x4, offset = 0x4, fixed_abs, tag = 'smem constant byte address 0x4 - core index']
  #allocation1 [shape = 'u32[72,128]{1,0:T(1,128)}', space=vmem, size = 0x9000, scoped, tag = 'internal scratch']
  %s0 = inlined_call_operand.vmem [shape: bf16[16,32], index: 0, kind: input, shape index: {}]
  %s1 = inlined_call_operand.vmem [shape: bf16[32,32], index: 1, kind: input, shape index: {}]
  %s2 = inlined_call_operand.vmem [shape: f32[1,32], index: 2, kind: input, shape index: {}]
  %s3 = inlined_call_operand.vmem [shape: bf16[16,32], index: 3, kind: input, shape index: {}]
  %s4 = inlined_call_operand.vmem [shape: bf16[16,32], index: 4, kind: output, shape index: {}]
  %s5 = sld [smem:[#allocation0]]
  $region26: #{sharnn_forward.23} parent=0
    _
  %s7 = ssub.s32 1, %s5
  %s8 = scalar_select 0, %s7, %s5
  // Predicated region
  $region2: #{sharnn_forward.23} parent=0 // pred_check
    _
  $region3: #{sharnn_forward.23} parent=0 // pred_check_branch
    %10 = sbr.rel (0) target = $region5
  $region4: #{sharnn_forward.23} parent=0 // pred_region
    _
  $region5: #{sharnn_forward.23} parent=0 // pred_fallthru
    _
  // Predicated region
  $region6: #{sharnn_forward.23} parent=0 // pred_check
    _
  $region7: #{sharnn_forward.23} parent=0 // pred_check_branch
    %12 = sbr.rel (0) target = $region9
  $region8: #{sharnn_forward.23} parent=0 // pred_region
    _
  $region9: #{sharnn_forward.23} parent=0 // pred_fallthru
    _
  // Predicated region
  $region10: #{sharnn_forward.23} parent=0 // pred_check
    _
  $region11: #{sharnn_forward.23} parent=0 // pred_check_branch
    %14 = sbr.rel (0) target = $region13
  $region12: #{sharnn_forward.23} parent=0 // pred_region
    _
  $region13: #{sharnn_forward.23} parent=0 // pred_fallthru
    _
  // Predicated region
  $region14: #{sharnn_forward.23} parent=0 // pred_check
    _
  $region15: #{sharnn_forward.23} parent=0 // pred_check_branch
    %16 = sbr.rel (0) target = $region17
  $region16: #{sharnn_forward.23} parent=0 // pred_region
    _
  $region17: #{sharnn_forward.23} parent=0 // pred_fallthru
    _
  %v18 = vld [vmem:[%s0] sm:$0xf]
  %v19 = vld [vmem:[%s0 + $0x4] sm:$0xf]
  %v20 = vld [vmem:[%s1] sm:$0xf]
  %v21 = vld [vmem:[%s1 + $0x4] sm:$0xf]
  %v22 = vld [vmem:[%s1 + $0x8] sm:$0xf]
  %v23 = vld [vmem:[%s1 + $0xc] sm:$0xf]
  %v24 = vld [vmem:[%s2] sm:$0x1]
  %v26 = vperm.slane %v24, 0
  %v30 = vunpack.c.l.b16 %v18
  %v31 = vunpack.c.l.b16 %v19
  %v32 = vpack.c.b16 %v31, %v30
  %v37 = vunpack.c.l.b16 %v20
  %v38 = vunpack.c.l.b16 %v21
  %v39 = vunpack.c.l.b16 %v22
  %v40 = vunpack.c.l.b16 %v23
  %v41 = vpack.c.b16 %v38, %v37
  %v42 = vpack.c.b16 %v40, %v39
  %vm45 = vcmask 261120
  %v47 = vsel %vm45, %v32, 0
  %49 = vmatpush.bf16.msra.mxu0 0
  %50 = vmatpush.bf16.msra.mxu0 0
  %51 = vmatpush.bf16.msra.mxu0 0
  %52 = vmatpush.bf16.msra.mxu0 0
  %53 = vmatpush.bf16.msra.mxu0 0
  %54 = vmatpush.bf16.msra.mxu0 0
  %55 = vmatpush.bf16.msra.mxu0 %v42
  %56 = vmatpush.bf16.msra.mxu0 %v41
  %57 = vmatmul.bf16.gmra.mxu0 %v47
  %v58 = vpop.f32.mrf.mxu0
  %v59 = vadd.f32 %v26, %v58
  %v60 = vpop.f32.mrf.mxu0
  %v61 = vadd.f32 %v26, %v60
  %62 = vdwg.mxu0
  %v63 = vld [vmem:[%s3] sm:$0xf]
  %v64 = vld [vmem:[%s3 + $0x4] sm:$0xf]
  %v65 = vunpack.c.l.bf16 %v63
  %v66 = vunpack.c.l.bf16 %v64
  %v67 = vadd.f32 %v59, %v65
  %v68 = vadd.f32 %v61, %v66
  %v69 = vpack.c.bf16 %v67, %v67
  %v70 = vpack.c.bf16 %v68, %v68
  %vm71 = vcmask 257024
  %72 = vst.msk [vmem:[%s4] sm:$0xf] %vm71, %v69
  %73 = vst.msk [vmem:[%s4 + $0x4] sm:$0xf] %vm71, %v70
  // Predicated region
  $region18: #{sharnn_forward.23} parent=0 // pred_check
    _
  $region19: #{sharnn_forward.23} parent=0 // pred_check_branch
    %75 = sbr.rel (0) target = $region21
  $region20: #{sharnn_forward.23} parent=0 // pred_region
    _
  $region21: #{sharnn_forward.23} parent=0 // pred_fallthru
    _
  // Predicated region
  $region22: #{sharnn_forward.23} parent=0 // pred_check
    _
  $region23: #{sharnn_forward.23} parent=0 // pred_check_branch
    %77 = sbr.rel (0) target = $region25
  $region24: #{sharnn_forward.23} parent=0 // pred_region
    _
  $region25: #{sharnn_forward.23} parent=0 // pred_fallthru
    _

</llo_original>
